<compile_context>
chip_gen: v7x
topology: tpu7x:2x2x1
jax: 0.10.0
libtpu: 0.0.40
codegen_flags: <defaults>
</compile_context>

<pallas_src>
import jax
import jax.numpy as jnp
from jax.experimental import pallas as pl
from jax.experimental.pallas import tpu as pltpu

NUM_LAYERS = 4
BN_EPS = 1e-5


# ----------------------------- Pallas kernel -------------------------------

def _fused_gcn_kernel(a_ref, p_ref, x_ref, wc_ref, bc_ref, wf_ref, bf_ref,
                      o_ref):
    """Whole GCN forward (eval mode) in one kernel.

    a_ref : [Np, Np]      dense normalized adjacency (zero-padded)
    p_ref : [Gp, Np]      one-hot global_add_pool matrix (zero-padded)
    x_ref : [Np, Dp]      node features (zero-padded feature columns)
    wc_ref: [L, Dp, Dp]   conv weights with BN scale folded in
    bc_ref: [L, 1,  Dp]   conv bias with BN scale/shift folded in
    wf_ref: [L+1, Dp, Cp] per-head FC weights (zero-padded)
    bf_ref: [1, Cp]       sum of the 5 FC biases (zero-padded)
    o_ref : [Gp, Cp]      summed logits (pre log_softmax)
    """
    a = a_ref[...]
    p = p_ref[...]
    h = x_ref[...]

    # head 0 operates on the raw input features: (P @ x) @ W_fc0
    pooled = jnp.dot(p, h, preferred_element_type=jnp.float32)
    logits = jnp.dot(pooled, wf_ref[0], preferred_element_type=jnp.float32)

    for i in range(NUM_LAYERS):  # static unroll over the 4 GCN layers
        xw = jnp.dot(h, wc_ref[i], preferred_element_type=jnp.float32)
        agg = jnp.dot(a, xw, preferred_element_type=jnp.float32)
        h = jnp.maximum(agg + bc_ref[i], 0.0)        # folded bias+BN, ReLU
        pooled = jnp.dot(p, h, preferred_element_type=jnp.float32)
        logits = logits + jnp.dot(pooled, wf_ref[i + 1],
                                  preferred_element_type=jnp.float32)

    o_ref[...] = logits + bf_ref[...]


# ----------------------------- JAX glue ------------------------------------

def _round_up(x, m):
    return ((x + m - 1) // m) * m


def _pad2(m, rows, cols):
    out = jnp.zeros((rows, cols), jnp.float32)
    return out.at[: m.shape[0], : m.shape[1]].set(m.astype(jnp.float32))


def build_normalized_adjacency(edge_index, num_nodes):
    """Dense A_hat = D^{-1/2} (A + I) D^{-1/2}, matching GCNConv gcn_norm."""
    src = edge_index[0]
    dst = edge_index[1]
    a = jnp.zeros((num_nodes, num_nodes), jnp.float32)
    # message flows source -> target: A[dst, src] accumulates (duplicates add)
    a = a.at[dst, src].add(1.0)
    a = a + jnp.eye(num_nodes, dtype=jnp.float32)      # add_self_loops
    deg = a.sum(axis=1)
    d_inv_sqrt = jnp.where(deg > 0, 1.0 / jnp.sqrt(deg), 0.0)
    return d_inv_sqrt[:, None] * a * d_inv_sqrt[None, :]


def gcn_forward(x, a_hat, pool_mat, params, num_classes):
    """Full GCN.forward (eval mode) via one fused Pallas call."""
    N, f_in = x.shape
    G = pool_mat.shape[0]
    H = params["convs"][0]["w"].shape[1]
    L = NUM_LAYERS

    # lane-dense padded sizes (last dims multiples of 128, sublane of 8)
    Np = _round_up(max(N, 128), 128)
    Dp = _round_up(max(f_in, H, 128), 128)
    Cp = _round_up(max(num_classes, 128), 128)
    Gp = _round_up(G, 8)

    # --- fold BatchNorm (running stats) into conv weight/bias, then pad ----
    wc_list, bc_list = [], []
    for i in range(L):
        conv, bn = params["convs"][i], params["bns"][i]
        scale = bn["gamma"] / jnp.sqrt(bn["var"] + BN_EPS)
        shift = bn["beta"] - bn["mean"] * scale
        w_fold = conv["w"] * scale[None, :]
        b_fold = conv["b"] * scale + shift
        wc_list.append(_pad2(w_fold, Dp, Dp))
        bc_list.append(_pad2(b_fold.reshape(1, -1), 1, Dp))
    wc = jnp.stack(wc_list)            # [L, Dp, Dp]
    bc = jnp.stack(bc_list)            # [L, 1, Dp]

    # --- stack/pad FC heads; sum the biases (heads are summed anyway) ------
    wf = jnp.stack([_pad2(params["fcs"][i]["w"], Dp, Cp) for i in range(L + 1)])
    bf = _pad2(sum(params["fcs"][i]["b"] for i in range(L + 1)).reshape(1, -1),
               1, Cp)

    a_pad = _pad2(a_hat, Np, Np)
    p_pad = _pad2(pool_mat, Gp, Np)
    x_pad = _pad2(x, Np, Dp)

    flops = (L * (2 * Np * Dp * Dp + 2 * Np * Np * Dp)
             + (L + 1) * (2 * Gp * Np * Dp + 2 * Gp * Dp * Cp))
    bytes_accessed = 4 * (Np * Np + Gp * Np + Np * Dp + L * Dp * Dp
                          + L * Dp + (L + 1) * Dp * Cp + Cp + Gp * Cp)
    cost = pl.CostEstimate(flops=flops, transcendentals=0,
                           bytes_accessed=bytes_accessed)

    spec = pl.BlockSpec(memory_space=pltpu.MemorySpace.VMEM)
    out_pad = pl.pallas_call(
        _fused_gcn_kernel,
        out_shape=jax.ShapeDtypeStruct((Gp, Cp), jnp.float32),
        in_specs=[spec] * 7,
        out_specs=spec,
        cost_estimate=cost,
    )(a_pad, p_pad, x_pad, wc, bc, wf, bf)

    out = out_pad[:G, :num_classes]
    # TODO(synk): F.dropout is identity in eval mode; no stochastic mask here.
    # log_softmax over classes (tiny [G, C] tensor -> plain JAX glue)
    return out - jax.scipy.special.logsumexp(out, axis=-1, keepdims=True)


def gcn_forward_ref(x, a_hat, pool_mat, params):
    """Pure-JAX reference (unpadded, unfused) for correctness checking."""
    outs = [x]
    h = x
    for i in range(NUM_LAYERS):
        conv, bn = params["convs"][i], params["bns"][i]
        h = a_hat @ (h @ conv["w"]) + conv["b"][None, :]
        scale = bn["gamma"] / jnp.sqrt(bn["var"] + BN_EPS)
        shift = bn["beta"] - bn["mean"] * scale
        h = jnp.maximum(h * scale + shift, 0.0)
        outs.append(h)
    out = 0.0
    for i, hx in enumerate(outs):
        fc = params["fcs"][i]
        out = out + (pool_mat @ hx) @ fc["w"] + fc["b"][None, :]
    return out - jax.scipy.special.logsumexp(out, axis=-1, keepdims=True)


# ----------------------------- Driver ---------------------------------------

if __name__ == "__main__":
    key = jax.random.PRNGKey(0)

    N = 64          # total nodes across batched graphs
    E = 256         # number of directed edges
    F_IN = 16       # input_dim
    H = 32          # args.hidden_dim
    C = 8           # output_dim (classes)
    G = 8           # number of graphs in the batch

    keys = jax.random.split(key, 32)
    ki = iter(range(32))

    # data.x, data.edge_index, data.batch
    x = jax.random.normal(keys[next(ki)], (N, F_IN), jnp.float32)
    edge_index = jax.random.randint(keys[next(ki)], (2, E), 0, N, jnp.int32)
    batch = jnp.repeat(jnp.arange(G, dtype=jnp.int32), N // G)

    def lin_init(k, fan_in, fan_out):
        kw, kb = jax.random.split(k)
        lim = 1.0 / jnp.sqrt(float(fan_in))
        return {
            "w": jax.random.uniform(kw, (fan_in, fan_out), jnp.float32, -lim, lim),
            "b": jax.random.uniform(kb, (fan_out,), jnp.float32, -lim, lim),
        }

    conv_dims = [(F_IN, H), (H, H), (H, H), (H, H)]
    convs = [lin_init(keys[next(ki)], di, do) for di, do in conv_dims]

    bns = []
    for _ in range(NUM_LAYERS):
        kg, kb2, km, kv = jax.random.split(keys[next(ki)], 4)
        bns.append({
            "gamma": 1.0 + 0.1 * jax.random.normal(kg, (H,), jnp.float32),
            "beta": 0.1 * jax.random.normal(kb2, (H,), jnp.float32),
            "mean": 0.1 * jax.random.normal(km, (H,), jnp.float32),
            "var": jnp.abs(1.0 + 0.1 * jax.random.normal(kv, (H,), jnp.float32)),
        })

    fc_dims = [(F_IN, C), (H, C), (H, C), (H, C), (H, C)]
    fcs = [lin_init(keys[next(ki)], di, do) for di, do in fc_dims]

    params = {"convs": convs, "bns": bns, "fcs": fcs}

    # dense normalized adjacency + one-hot pooling matrix (glue)
    a_hat = build_normalized_adjacency(edge_index, N)
    pool_mat = (batch[None, :] == jnp.arange(G, dtype=jnp.int32)[:, None]
                ).astype(jnp.float32)  # [G, N]

    out = gcn_forward(x, a_hat, pool_mat, params, C)
    jax.block_until_ready(out)

    assert out.shape == (G, C)
    assert bool(jnp.all(jnp.isfinite(out)))
    # rows of log_softmax exponentiate-sum to 1
    assert bool(jnp.allclose(jnp.exp(out).sum(-1), 1.0, atol=1e-4))
    # match the pure-JAX reference (BN fold + padding are exact up to fp error)
    ref = gcn_forward_ref(x, a_hat, pool_mat, params)
    assert bool(jnp.allclose(out, ref, atol=1e-3, rtol=1e-3))

    print("KERNEL_OK")
</pallas_src>

<mosaic_0001>
module attributes {stable_mosaic.version = 11 : i64} {
  func.func @_fused_gcn_kernel(%arg0: memref<128x128xf32, #tpu.memory_space<vmem>>, %arg1: memref<8x128xf32, #tpu.memory_space<vmem>>, %arg2: memref<128x128xf32, #tpu.memory_space<vmem>>, %arg3: memref<4x128x128xf32, #tpu.memory_space<vmem>>, %arg4: memref<4x1x128xf32, #tpu.memory_space<vmem>>, %arg5: memref<5x128x128xf32, #tpu.memory_space<vmem>>, %arg6: memref<1x128xf32, #tpu.memory_space<vmem>>, %arg7: memref<8x128xf32, #tpu.memory_space<vmem>>) attributes {dimension_semantics = [], scalar_prefetch = 0 : i64, scratch_operands = 0 : i64, tpu.core_type = #tpu.core_type<tc>} {
    %c0 = arith.constant 0 : index
    %c0_0 = arith.constant 0 : index
    %0 = vector.load %arg0[%c0, %c0_0] : memref<128x128xf32, #tpu.memory_space<vmem>>, vector<128x128xf32>
    %c0_1 = arith.constant 0 : index
    %c0_2 = arith.constant 0 : index
    %1 = vector.load %arg1[%c0_1, %c0_2] : memref<8x128xf32, #tpu.memory_space<vmem>>, vector<8x128xf32>
    %c0_3 = arith.constant 0 : index
    %c0_4 = arith.constant 0 : index
    %2 = vector.load %arg2[%c0_3, %c0_4] : memref<128x128xf32, #tpu.memory_space<vmem>>, vector<128x128xf32>
    %cst = arith.constant dense<0.000000e+00> : vector<8x128xf32>
    %3 = tpu.matmul %1, %2, %cst {dimension_numbers = #tpu.dot_dimension_numbers<[1], [0], [0], [1], [0, 0, 1, 1], [], []>} : vector<8x128xf32>, vector<128x128xf32>, vector<8x128xf32> -> vector<8x128xf32>
    %c0_5 = arith.constant 0 : index
    %c0_6 = arith.constant 0 : index
    %c0_7 = arith.constant 0 : index
    %4 = vector.load %arg5[%c0_5, %c0_6, %c0_7] : memref<5x128x128xf32, #tpu.memory_space<vmem>>, vector<1x128x128xf32>
    %5 = vector.shape_cast %4 : vector<1x128x128xf32> to vector<128x128xf32>
    %cst_8 = arith.constant dense<0.000000e+00> : vector<8x128xf32>
    %6 = tpu.matmul %3, %5, %cst_8 {dimension_numbers = #tpu.dot_dimension_numbers<[1], [0], [0], [1], [0, 0, 1, 1], [], []>} : vector<8x128xf32>, vector<128x128xf32>, vector<8x128xf32> -> vector<8x128xf32>
    %c0_9 = arith.constant 0 : index
    %c0_10 = arith.constant 0 : index
    %c0_11 = arith.constant 0 : index
    %7 = vector.load %arg3[%c0_9, %c0_10, %c0_11] : memref<4x128x128xf32, #tpu.memory_space<vmem>>, vector<1x128x128xf32>
    %8 = vector.shape_cast %7 : vector<1x128x128xf32> to vector<128x128xf32>
    %cst_12 = arith.constant dense<0.000000e+00> : vector<128x128xf32>
    %9 = tpu.matmul %2, %8, %cst_12 {dimension_numbers = #tpu.dot_dimension_numbers<[1], [0], [0], [1], [0, 0, 1, 1], [], []>} : vector<128x128xf32>, vector<128x128xf32>, vector<128x128xf32> -> vector<128x128xf32>
    %cst_13 = arith.constant dense<0.000000e+00> : vector<128x128xf32>
    %10 = tpu.matmul %0, %9, %cst_13 {dimension_numbers = #tpu.dot_dimension_numbers<[1], [0], [0], [1], [0, 0, 1, 1], [], []>} : vector<128x128xf32>, vector<128x128xf32>, vector<128x128xf32> -> vector<128x128xf32>
    %c0_14 = arith.constant 0 : index
    %c0_15 = arith.constant 0 : index
    %c0_16 = arith.constant 0 : index
    %11 = vector.load %arg4[%c0_14, %c0_15, %c0_16] : memref<4x1x128xf32, #tpu.memory_space<vmem>>, vector<1x1x128xf32>
    %12 = vector.shape_cast %11 : vector<1x1x128xf32> to vector<1x128xf32>
    %13 = vector.broadcast %12 : vector<1x128xf32> to vector<128x128xf32>
    %14 = arith.addf %10, %13 : vector<128x128xf32>
    %cst_17 = arith.constant 0.000000e+00 : f32
    %15 = vector.broadcast %cst_17 : f32 to vector<128x128xf32>
    %16 = arith.maximumf %14, %15 : vector<128x128xf32>
    %cst_18 = arith.constant dense<0.000000e+00> : vector<8x128xf32>
    %17 = tpu.matmul %1, %16, %cst_18 {dimension_numbers = #tpu.dot_dimension_numbers<[1], [0], [0], [1], [0, 0, 1, 1], [], []>} : vector<8x128xf32>, vector<128x128xf32>, vector<8x128xf32> -> vector<8x128xf32>
    %c1 = arith.constant 1 : index
    %c0_19 = arith.constant 0 : index
    %c0_20 = arith.constant 0 : index
    %18 = vector.load %arg5[%c1, %c0_19, %c0_20] : memref<5x128x128xf32, #tpu.memory_space<vmem>>, vector<1x128x128xf32>
    %19 = vector.shape_cast %18 : vector<1x128x128xf32> to vector<128x128xf32>
    %cst_21 = arith.constant dense<0.000000e+00> : vector<8x128xf32>
    %20 = tpu.matmul %17, %19, %cst_21 {dimension_numbers = #tpu.dot_dimension_numbers<[1], [0], [0], [1], [0, 0, 1, 1], [], []>} : vector<8x128xf32>, vector<128x128xf32>, vector<8x128xf32> -> vector<8x128xf32>
    %21 = arith.addf %6, %20 : vector<8x128xf32>
    %c1_22 = arith.constant 1 : index
    %c0_23 = arith.constant 0 : index
    %c0_24 = arith.constant 0 : index
    %22 = vector.load %arg3[%c1_22, %c0_23, %c0_24] : memref<4x128x128xf32, #tpu.memory_space<vmem>>, vector<1x128x128xf32>
    %23 = vector.shape_cast %22 : vector<1x128x128xf32> to vector<128x128xf32>
    %cst_25 = arith.constant dense<0.000000e+00> : vector<128x128xf32>
    %24 = tpu.matmul %16, %23, %cst_25 {dimension_numbers = #tpu.dot_dimension_numbers<[1], [0], [0], [1], [0, 0, 1, 1], [], []>} : vector<128x128xf32>, vector<128x128xf32>, vector<128x128xf32> -> vector<128x128xf32>
    %cst_26 = arith.constant dense<0.000000e+00> : vector<128x128xf32>
    %25 = tpu.matmul %0, %24, %cst_26 {dimension_numbers = #tpu.dot_dimension_numbers<[1], [0], [0], [1], [0, 0, 1, 1], [], []>} : vector<128x128xf32>, vector<128x128xf32>, vector<128x128xf32> -> vector<128x128xf32>
    %c1_27 = arith.constant 1 : index
    %c0_28 = arith.constant 0 : index
    %c0_29 = arith.constant 0 : index
    %26 = vector.load %arg4[%c1_27, %c0_28, %c0_29] : memref<4x1x128xf32, #tpu.memory_space<vmem>>, vector<1x1x128xf32>
    %27 = vector.shape_cast %26 : vector<1x1x128xf32> to vector<1x128xf32>
    %28 = vector.broadcast %27 : vector<1x128xf32> to vector<128x128xf32>
    %29 = arith.addf %25, %28 : vector<128x128xf32>
    %cst_30 = arith.constant 0.000000e+00 : f32
    %30 = vector.broadcast %cst_30 : f32 to vector<128x128xf32>
    %31 = arith.maximumf %29, %30 : vector<128x128xf32>
    %cst_31 = arith.constant dense<0.000000e+00> : vector<8x128xf32>
    %32 = tpu.matmul %1, %31, %cst_31 {dimension_numbers = #tpu.dot_dimension_numbers<[1], [0], [0], [1], [0, 0, 1, 1], [], []>} : vector<8x128xf32>, vector<128x128xf32>, vector<8x128xf32> -> vector<8x128xf32>
    %c2 = arith.constant 2 : index
    %c0_32 = arith.constant 0 : index
    %c0_33 = arith.constant 0 : index
    %33 = vector.load %arg5[%c2, %c0_32, %c0_33] : memref<5x128x128xf32, #tpu.memory_space<vmem>>, vector<1x128x128xf32>
    %34 = vector.shape_cast %33 : vector<1x128x128xf32> to vector<128x128xf32>
    %cst_34 = arith.constant dense<0.000000e+00> : vector<8x128xf32>
    %35 = tpu.matmul %32, %34, %cst_34 {dimension_numbers = #tpu.dot_dimension_numbers<[1], [0], [0], [1], [0, 0, 1, 1], [], []>} : vector<8x128xf32>, vector<128x128xf32>, vector<8x128xf32> -> vector<8x128xf32>
    %36 = arith.addf %21, %35 : vector<8x128xf32>
    %c2_35 = arith.constant 2 : index
    %c0_36 = arith.constant 0 : index
    %c0_37 = arith.constant 0 : index
    %37 = vector.load %arg3[%c2_35, %c0_36, %c0_37] : memref<4x128x128xf32, #tpu.memory_space<vmem>>, vector<1x128x128xf32>
    %38 = vector.shape_cast %37 : vector<1x128x128xf32> to vector<128x128xf32>
    %cst_38 = arith.constant dense<0.000000e+00> : vector<128x128xf32>
    %39 = tpu.matmul %31, %38, %cst_38 {dimension_numbers = #tpu.dot_dimension_numbers<[1], [0], [0], [1], [0, 0, 1, 1], [], []>} : vector<128x128xf32>, vector<128x128xf32>, vector<128x128xf32> -> vector<128x128xf32>
    %cst_39 = arith.constant dense<0.000000e+00> : vector<128x128xf32>
    %40 = tpu.matmul %0, %39, %cst_39 {dimension_numbers = #tpu.dot_dimension_numbers<[1], [0], [0], [1], [0, 0, 1, 1], [], []>} : vector<128x128xf32>, vector<128x128xf32>, vector<128x128xf32> -> vector<128x128xf32>
    %c2_40 = arith.constant 2 : index
    %c0_41 = arith.constant 0 : index
    %c0_42 = arith.constant 0 : index
    %41 = vector.load %arg4[%c2_40, %c0_41, %c0_42] : memref<4x1x128xf32, #tpu.memory_space<vmem>>, vector<1x1x128xf32>
    %42 = vector.shape_cast %41 : vector<1x1x128xf32> to vector<1x128xf32>
    %43 = vector.broadcast %42 : vector<1x128xf32> to vector<128x128xf32>
    %44 = arith.addf %40, %43 : vector<128x128xf32>
    %cst_43 = arith.constant 0.000000e+00 : f32
    %45 = vector.broadcast %cst_43 : f32 to vector<128x128xf32>
    %46 = arith.maximumf %44, %45 : vector<128x128xf32>
    %cst_44 = arith.constant dense<0.000000e+00> : vector<8x128xf32>
    %47 = tpu.matmul %1, %46, %cst_44 {dimension_numbers = #tpu.dot_dimension_numbers<[1], [0], [0], [1], [0, 0, 1, 1], [], []>} : vector<8x128xf32>, vector<128x128xf32>, vector<8x128xf32> -> vector<8x128xf32>
    %c3 = arith.constant 3 : index
    %c0_45 = arith.constant 0 : index
    %c0_46 = arith.constant 0 : index
    %48 = vector.load %arg5[%c3, %c0_45, %c0_46] : memref<5x128x128xf32, #tpu.memory_space<vmem>>, vector<1x128x128xf32>
    %49 = vector.shape_cast %48 : vector<1x128x128xf32> to vector<128x128xf32>
    %cst_47 = arith.constant dense<0.000000e+00> : vector<8x128xf32>
    %50 = tpu.matmul %47, %49, %cst_47 {dimension_numbers = #tpu.dot_dimension_numbers<[1], [0], [0], [1], [0, 0, 1, 1], [], []>} : vector<8x128xf32>, vector<128x128xf32>, vector<8x128xf32> -> vector<8x128xf32>
    %51 = arith.addf %36, %50 : vector<8x128xf32>
    %c3_48 = arith.constant 3 : index
    %c0_49 = arith.constant 0 : index
    %c0_50 = arith.constant 0 : index
    %52 = vector.load %arg3[%c3_48, %c0_49, %c0_50] : memref<4x128x128xf32, #tpu.memory_space<vmem>>, vector<1x128x128xf32>
    %53 = vector.shape_cast %52 : vector<1x128x128xf32> to vector<128x128xf32>
    %cst_51 = arith.constant dense<0.000000e+00> : vector<128x128xf32>
    %54 = tpu.matmul %46, %53, %cst_51 {dimension_numbers = #tpu.dot_dimension_numbers<[1], [0], [0], [1], [0, 0, 1, 1], [], []>} : vector<128x128xf32>, vector<128x128xf32>, vector<128x128xf32> -> vector<128x128xf32>
    %cst_52 = arith.constant dense<0.000000e+00> : vector<128x128xf32>
    %55 = tpu.matmul %0, %54, %cst_52 {dimension_numbers = #tpu.dot_dimension_numbers<[1], [0], [0], [1], [0, 0, 1, 1], [], []>} : vector<128x128xf32>, vector<128x128xf32>, vector<128x128xf32> -> vector<128x128xf32>
    %c3_53 = arith.constant 3 : index
    %c0_54 = arith.constant 0 : index
    %c0_55 = arith.constant 0 : index
    %56 = vector.load %arg4[%c3_53, %c0_54, %c0_55] : memref<4x1x128xf32, #tpu.memory_space<vmem>>, vector<1x1x128xf32>
    %57 = vector.shape_cast %56 : vector<1x1x128xf32> to vector<1x128xf32>
    %58 = vector.broadcast %57 : vector<1x128xf32> to vector<128x128xf32>
    %59 = arith.addf %55, %58 : vector<128x128xf32>
    %cst_56 = arith.constant 0.000000e+00 : f32
    %60 = vector.broadcast %cst_56 : f32 to vector<128x128xf32>
    %61 = arith.maximumf %59, %60 : vector<128x128xf32>
    %cst_57 = arith.constant dense<0.000000e+00> : vector<8x128xf32>
    %62 = tpu.matmul %1, %61, %cst_57 {dimension_numbers = #tpu.dot_dimension_numbers<[1], [0], [0], [1], [0, 0, 1, 1], [], []>} : vector<8x128xf32>, vector<128x128xf32>, vector<8x128xf32> -> vector<8x128xf32>
    %c4 = arith.constant 4 : index
    %c0_58 = arith.constant 0 : index
    %c0_59 = arith.constant 0 : index
    %63 = vector.load %arg5[%c4, %c0_58, %c0_59] : memref<5x128x128xf32, #tpu.memory_space<vmem>>, vector<1x128x128xf32>
    %64 = vector.shape_cast %63 : vector<1x128x128xf32> to vector<128x128xf32>
    %cst_60 = arith.constant dense<0.000000e+00> : vector<8x128xf32>
    %65 = tpu.matmul %62, %64, %cst_60 {dimension_numbers = #tpu.dot_dimension_numbers<[1], [0], [0], [1], [0, 0, 1, 1], [], []>} : vector<8x128xf32>, vector<128x128xf32>, vector<8x128xf32> -> vector<8x128xf32>
    %66 = arith.addf %51, %65 : vector<8x128xf32>
    %c0_61 = arith.constant 0 : index
    %c0_62 = arith.constant 0 : index
    %67 = vector.load %arg6[%c0_61, %c0_62] : memref<1x128xf32, #tpu.memory_space<vmem>>, vector<1x128xf32>
    %68 = vector.broadcast %67 : vector<1x128xf32> to vector<8x128xf32>
    %69 = arith.addf %66, %68 : vector<8x128xf32>
    %c0_63 = arith.constant 0 : index
    %c0_64 = arith.constant 0 : index
    %70 = vector.load %arg7[%c0_63, %c0_64] : memref<8x128xf32, #tpu.memory_space<vmem>>, vector<8x128xf32>
    tpu.vector_store %arg7[%c0_63, %c0_64], %69 {strides = array<i32>} : memref<8x128xf32, #tpu.memory_space<vmem>>, vector<8x128xf32>,
    return
  }
}

</mosaic_0001>

<llo_original>
// kernel: tpu_custom_call.1
$region0: #{tpu_custom_call.1}
  #allocation0 [shape = 'u32[]', space=smem, size = 0x4, offset = 0x4, fixed_abs, tag = 'smem constant byte address 0x4 - core index']
  #allocation1 [shape = 'u32[144,128]{1,0:T(1,128)}', space=vmem, size = 0x12000, scoped, tag = 'internal scratch']
  %s0 = inlined_call_operand.hbm [shape: f32[128,128], index: 0, kind: input, shape index: {}]
  %s1 = inlined_call_operand.hbm [shape: f32[8,128], index: 1, kind: input, shape index: {}]
  %s2 = inlined_call_operand.hbm [shape: f32[128,128], index: 2, kind: input, shape index: {}]
  %s3 = inlined_call_operand.hbm [shape: f32[4,128,128], index: 3, kind: input, shape index: {}]
  %s4 = inlined_call_operand.vmem [shape: f32[4,1,128], index: 4, kind: input, shape index: {}]
  %s5 = inlined_call_operand.hbm [shape: f32[5,128,128], index: 5, kind: input, shape index: {}]
  %s6 = inlined_call_operand.vmem [shape: f32[1,128], index: 6, kind: input, shape index: {}]
  %s7 = inlined_call_operand.hbm [shape: f32[8,128], index: 7, kind: output, shape index: {}]
  %s8 = sld [smem:[#allocation0]]
  $region58: #{tpu_custom_call.1} parent=0
    _
  %s10 = ssub.s32 1, %s8
  %s11 = scalar_select 0, %s10, %s8
  $region1: #{tpu_custom_call.1} parent=0
    #allocation2 [shape = 'u8[65536]{0}', space=vmem, size = 0x10000, scoped, tag = 'input window, operand 0, single buffered']
    #allocation3 [shape = 's32[1]{0}', space=sflag, size = 0x4, scoped, tag = 'scoped memory for tpu_custom_call.1']
    #allocation4 [shape = 's32[1]{0}', space=sflag, size = 0x4, scoped, tag = 'scoped memory for tpu_custom_call.1']
    #allocation5 [shape = 'u8[4096]{0}', space=vmem, size = 0x1000, scoped, tag = 'input window, operand 1, single buffered']
    #allocation6 [shape = 's32[1]{0}', space=sflag, size = 0x4, scoped, tag = 'scoped memory for tpu_custom_call.1']
    #allocation7 [shape = 'u8[65536]{0}', space=vmem, size = 0x10000, scoped, tag = 'input window, operand 2, single buffered']
    #allocation8 [shape = 'u8[262144]{0}', space=vmem, size = 0x40000, scoped, tag = 'input window, operand 3, single buffered']
    #allocation9 [shape = 's32[1]{0}', space=sflag, size = 0x4, scoped, tag = 'scoped memory for tpu_custom_call.1']
    #allocation10 [shape = 'u8[327680]{0}', space=vmem, size = 0x50000, scoped, tag = 'input window, operand 5, single buffered']
    #allocation11 [shape = 'u8[4096]{0}', space=vmem, size = 0x1000, scoped, tag = 'output window, operand 0, single buffered']
    %12 = vsyncpa [#allocation3], 0
    %13 = vsyncpa [#allocation6], 0
    %14 = vsyncpa [#allocation9], 0
    %15 = vsyncpa [#allocation4], 0
    // Predicated region
    $region2: #{tpu_custom_call.1} parent=1 // pred_check
      _
    $region3: #{tpu_custom_call.1} parent=1 // pred_check_branch
      %17 = sbr.rel (0) target = $region5
    $region4: #{tpu_custom_call.1} parent=1 // pred_region
      %s19 = ssub.s32 2048, 2048
      %20 = vsyncadd [#allocation3], %s19
      %s21 = sshll.u32 [#allocation2], 4
      %s22 = int_to_ptr.vmem [resolvable:$true] %s21
      %27 = dma.hbm_to_vmem [thread:$0]  %s0, 2048, %s22, [#allocation3], 128, 128, 8
    $region5: #{tpu_custom_call.1} parent=1 // pred_fallthru
      _
    // Predicated region
    $region6: #{tpu_custom_call.1} parent=1 // pred_check
      _
    $region7: #{tpu_custom_call.1} parent=1 // pred_check_branch
      %29 = sbr.rel (0) target = $region9
    $region8: #{tpu_custom_call.1} parent=1 // pred_region
      %s31 = ssub.s32 128, 128
      %32 = vsyncadd [#allocation6], %s31
      %s34 = sshll.u32 [#allocation5], 4
      %s35 = int_to_ptr.vmem [resolvable:$true] %s34
      %37 = dma.hbm_to_vmem [thread:$0]  %s1, 128, %s35, [#allocation6]
    $region9: #{tpu_custom_call.1} parent=1 // pred_fallthru
      _
    // Predicated region
    $region10: #{tpu_custom_call.1} parent=1 // pred_check
      _
    $region11: #{tpu_custom_call.1} parent=1 // pred_check_branch
      %39 = sbr.rel (0) target = $region13
    $region12: #{tpu_custom_call.1} parent=1 // pred_region
      %s41 = ssub.s32 2048, 2048
      %42 = vsyncadd [#allocation6], %s41
      %s43 = sshll.u32 [#allocation7], 4
      %s44 = int_to_ptr.vmem [resolvable:$true] %s43
      %49 = dma.hbm_to_vmem [thread:$0]  %s2, 2048, %s44, [#allocation6], 128, 128, 8
    $region13: #{tpu_custom_call.1} parent=1 // pred_fallthru
      _
    // Predicated region
    $region14: #{tpu_custom_call.1} parent=1 // pred_check
      _
    $region15: #{tpu_custom_call.1} parent=1 // pred_check_branch
      %51 = sbr.rel (0) target = $region17
    $region16: #{tpu_custom_call.1} parent=1 // pred_region
      %s53 = ssub.s32 8192, 8192
      %54 = vsyncadd [#allocation9], %s53
      %s55 = sshll.u32 [#allocation8], 4
      %s56 = int_to_ptr.vmem [resolvable:$true] %s55
      %61 = dma.hbm_to_vmem [thread:$0]  %s3, 8192, %s56, [#allocation9], 128, 128, 8
    $region17: #{tpu_custom_call.1} parent=1 // pred_fallthru
      _
    // Predicated region
    $region18: #{tpu_custom_call.1} parent=1 // pred_check
      _
    $region19: #{tpu_custom_call.1} parent=1 // pred_check_branch
      %63 = sbr.rel (0) target = $region21
    $region20: #{tpu_custom_call.1} parent=1 // pred_region
      _
    $region21: #{tpu_custom_call.1} parent=1 // pred_fallthru
      _
    // Predicated region
    $region22: #{tpu_custom_call.1} parent=1 // pred_check
      _
    $region23: #{tpu_custom_call.1} parent=1 // pred_check_branch
      %65 = sbr.rel (0) target = $region25
    $region24: #{tpu_custom_call.1} parent=1 // pred_region
      %s67 = ssub.s32 10240, 10240
      %68 = vsyncadd [#allocation9], %s67
      %s69 = sshll.u32 [#allocation10], 4
      %s70 = int_to_ptr.vmem [resolvable:$true] %s69
      %75 = dma.hbm_to_vmem [thread:$0]  %s5, 10240, %s70, [#allocation9], 128, 128, 8
    $region25: #{tpu_custom_call.1} parent=1 // pred_fallthru
      _
    // Predicated region
    $region26: #{tpu_custom_call.1} parent=1 // pred_check
      _
    $region27: #{tpu_custom_call.1} parent=1 // pred_check_branch
      %77 = sbr.rel (0) target = $region29
    $region28: #{tpu_custom_call.1} parent=1 // pred_region
      _
    $region29: #{tpu_custom_call.1} parent=1 // pred_fallthru
      _
    // Predicated region
    $region30: #{tpu_custom_call.1} parent=1 // pred_check
      _
    $region31: #{tpu_custom_call.1} parent=1 // pred_check_branch
      %79 = sbr.rel (0) target = $region33
    $region32: #{tpu_custom_call.1} parent=1 // pred_region
      %80 = dma.done [#allocation3], 2048
    $region33: #{tpu_custom_call.1} parent=1 // pred_fallthru
      _
    // Predicated region
    $region34: #{tpu_custom_call.1} parent=1 // pred_check
      _
    $region35: #{tpu_custom_call.1} parent=1 // pred_check_branch
      %82 = sbr.rel (0) target = $region37
    $region36: #{tpu_custom_call.1} parent=1 // pred_region
      %83 = dma.done [#allocation6], 128
    $region37: #{tpu_custom_call.1} parent=1 // pred_fallthru
      _
    // Predicated region
    $region38: #{tpu_custom_call.1} parent=1 // pred_check
      _
    $region39: #{tpu_custom_call.1} parent=1 // pred_check_branch
      %85 = sbr.rel (0) target = $region41
    $region40: #{tpu_custom_call.1} parent=1 // pred_region
      %86 = dma.done [#allocation6], 2048
    $region41: #{tpu_custom_call.1} parent=1 // pred_fallthru
      _
    // Predicated region
    $region42: #{tpu_custom_call.1} parent=1 // pred_check
      _
    $region43: #{tpu_custom_call.1} parent=1 // pred_check_branch
      %88 = sbr.rel (0) target = $region45
    $region44: #{tpu_custom_call.1} parent=1 // pred_region
      %89 = dma.done [#allocation9], 8192
    $region45: #{tpu_custom_call.1} parent=1 // pred_fallthru
      _
    // Predicated region
    $region46: #{tpu_custom_call.1} parent=1 // pred_check
      _
    $region47: #{tpu_custom_call.1} parent=1 // pred_check_branch
      %91 = sbr.rel (0) target = $region49
    $region48: #{tpu_custom_call.1} parent=1 // pred_region
      %92 = dma.done [#allocation9], 10240
    $region49: #{tpu_custom_call.1} parent=1 // pred_fallthru
      _
    %v93 = vld [vmem:[#allocation2] sm:$0xff]
    %v94 = vld [vmem:[#allocation2 + $0x8] sm:$0xff]
    %v95 = vld [vmem:[#allocation2 + $0x10] sm:$0xff]
    %v96 = vld [vmem:[#allocation2 + $0x18] sm:$0xff]
    %v97 = vld [vmem:[#allocation2 + $0x20] sm:$0xff]
    %v98 = vld [vmem:[#allocation2 + $0x28] sm:$0xff]
    %v99 = vld [vmem:[#allocation2 + $0x30] sm:$0xff]
    %v100 = vld [vmem:[#allocation2 + $0x38] sm:$0xff]
    %v101 = vld [vmem:[#allocation2 + $0x40] sm:$0xff]
    %v102 = vld [vmem:[#allocation2 + $0x48] sm:$0xff]
    %v103 = vld [vmem:[#allocation2 + $0x50] sm:$0xff]
    %v104 = vld [vmem:[#allocation2 + $0x58] sm:$0xff]
    %v105 = vld [vmem:[#allocation2 + $0x60] sm:$0xff]
    %v106 = vld [vmem:[#allocation2 + $0x68] sm:$0xff]
    %v107 = vld [vmem:[#allocation2 + $0x70] sm:$0xff]
    %v108 = vld [vmem:[#allocation2 + $0x78] sm:$0xff]
    %v109 = vld [vmem:[#allocation5] sm:$0xff]
    %v110 = vld [vmem:[#allocation7] sm:$0xff]
    %v111 = vld [vmem:[#allocation7 + $0x8] sm:$0xff]
    %v112 = vld [vmem:[#allocation7 + $0x10] sm:$0xff]
    %v113 = vld [vmem:[#allocation7 + $0x18] sm:$0xff]
    %v114 = vld [vmem:[#allocation7 + $0x20] sm:$0xff]
    %v115 = vld [vmem:[#allocation7 + $0x28] sm:$0xff]
    %v116 = vld [vmem:[#allocation7 + $0x30] sm:$0xff]
    %v117 = vld [vmem:[#allocation7 + $0x38] sm:$0xff]
    %v118 = vld [vmem:[#allocation7 + $0x40] sm:$0xff]
    %v119 = vld [vmem:[#allocation7 + $0x48] sm:$0xff]
    %v120 = vld [vmem:[#allocation7 + $0x50] sm:$0xff]
    %v121 = vld [vmem:[#allocation7 + $0x58] sm:$0xff]
    %v122 = vld [vmem:[#allocation7 + $0x60] sm:$0xff]
    %v123 = vld [vmem:[#allocation7 + $0x68] sm:$0xff]
    %v124 = vld [vmem:[#allocation7 + $0x70] sm:$0xff]
    %v125 = vld [vmem:[#allocation7 + $0x78] sm:$0xff]
    %126 = vmatprep.subr.mxu0 0.0
    %127 = vmatpush1.msra.mxu0 %v110
    %128 = vmatprep.subr.mxu0 0.0
    %129 = vmatpush1.msra.mxu0 %v111
    %130 = vmatprep.subr.mxu0 0.0
    %131 = vmatpush1.msra.mxu0 %v112
    %132 = vmatprep.subr.mxu0 0.0
    %133 = vmatpush1.msra.mxu0 %v113
    %134 = vmatprep.subr.mxu0 0.0
    %135 = vmatpush1.msra.mxu0 %v114
    %136 = vmatprep.subr.mxu0 0.0
    %137 = vmatpush1.msra.mxu0 %v115
    %138 = vmatprep.subr.mxu0 0.0
    %139 = vmatpush1.msra.mxu0 %v116
    %140 = vmatprep.subr.mxu0 0.0
    %141 = vmatpush1.msra.mxu0 %v117
    %142 = vmatprep.subr.mxu0 0.0
    %143 = vmatpush1.msra.mxu0 %v118
    %144 = vmatprep.subr.mxu0 0.0
    %145 = vmatpush1.msra.mxu0 %v119
    %146 = vmatprep.subr.mxu0 0.0
    %147 = vmatpush1.msra.mxu0 %v120
    %148 = vmatprep.subr.mxu0 0.0
    %149 = vmatpush1.msra.mxu0 %v121
    %150 = vmatprep.subr.mxu0 0.0
    %151 = vmatpush1.msra.mxu0 %v122
    %152 = vmatprep.subr.mxu0 0.0
    %153 = vmatpush1.msra.mxu0 %v123
    %154 = vmatprep.subr.mxu0 0.0
    %155 = vmatpush1.msra.mxu0 %v124
    %156 = vmatprep.subr.mxu0 0.0
    %157 = vmatpush1.msra.mxu0 %v125
    %158 = vmatprep.subr.mxu0 0.0
    %159 = vmatpush1.msra.mxu0 0.0
    %160 = vmatprep.subr.mxu0 0.0
    %161 = vmatpush1.msra.mxu0 0.0
    %162 = vmatprep.subr.mxu0 0.0
    %163 = vmatpush1.msra.mxu0 0.0
    %164 = vmatprep.subr.mxu0 0.0
    %165 = vmatpush1.msra.mxu0 0.0
    %166 = vmatprep.subr.mxu0 0.0
    %167 = vmatpush1.msra.mxu0 0.0
    %168 = vmatprep.subr.mxu0 0.0
    %169 = vmatpush1.msra.mxu0 0.0
    %170 = vmatprep.subr.mxu0 0.0
    %171 = vmatpush1.msra.mxu0 0.0
    %172 = vmatprep.subr.mxu0 0.0
    %173 = vmatpush1.msra.mxu0 0.0
    %174 = vmatprep.subr.mxu0 0.0
    %175 = vmatpush1.msra.mxu0 0.0
    %176 = vmatprep.subr.mxu0 0.0
    %177 = vmatpush1.msra.mxu0 0.0
    %178 = vmatprep.subr.mxu0 0.0
    %179 = vmatpush1.msra.mxu0 0.0
    %180 = vmatprep.subr.mxu0 0.0
    %181 = vmatpush1.msra.mxu0 0.0
    %182 = vmatprep.subr.mxu0 0.0
    %183 = vmatpush1.msra.mxu0 0.0
    %184 = vmatprep.subr.mxu0 0.0
    %185 = vmatpush1.msra.mxu0 0.0
    %186 = vmatprep.subr.mxu0 0.0
    %187 = vmatpush1.msra.mxu0 0.0
    %188 = vmatprep.subr.mxu0 0.0
    %189 = vmatpush1.msra.mxu0 0.0
    %190 = vmatprep.mubr.f32.mxu0 0.0
    %191 = vmatmul.mubr.f32.gmra.mrb[0].mxu0 %v109
    %v192 = vpop.f32.mrb[0].mxu0
    %v193 = vadd.f32 0.0, %v192
    %v194 = vpop.f32.mrb[0].mxu0
    %195 = vdwg.mxu0
    %v196 = vld [vmem:[#allocation10] sm:$0xff]
    %v197 = vld [vmem:[#allocation10 + $0x8] sm:$0xff]
    %v198 = vld [vmem:[#allocation10 + $0x10] sm:$0xff]
    %v199 = vld [vmem:[#allocation10 + $0x18] sm:$0xff]
    %v200 = vld [vmem:[#allocation10 + $0x20] sm:$0xff]
    %v201 = vld [vmem:[#allocation10 + $0x28] sm:$0xff]
    %v202 = vld [vmem:[#allocation10 + $0x30] sm:$0xff]
    %v203 = vld [vmem:[#allocation10 + $0x38] sm:$0xff]
    %v204 = vld [vmem:[#allocation10 + $0x40] sm:$0xff]
    %v205 = vld [vmem:[#allocation10 + $0x48] sm:$0xff]
    %v206 = vld [vmem:[#allocation10 + $0x50] sm:$0xff]
    %v207 = vld [vmem:[#allocation10 + $0x58] sm:$0xff]
    %v208 = vld [vmem:[#allocation10 + $0x60] sm:$0xff]
    %v209 = vld [vmem:[#allocation10 + $0x68] sm:$0xff]
    %v210 = vld [vmem:[#allocation10 + $0x70] sm:$0xff]
    %v211 = vld [vmem:[#allocation10 + $0x78] sm:$0xff]
    %v212 = vld [vmem:[#allocation8] sm:$0xff]
    %v213 = vld [vmem:[#allocation8 + $0x8] sm:$0xff]
    %v214 = vld [vmem:[#allocation8 + $0x10] sm:$0xff]
    %v215 = vld [vmem:[#allocation8 + $0x18] sm:$0xff]
    %v216 = vld [vmem:[#allocation8 + $0x20] sm:$0xff]
    %v217 = vld [vmem:[#allocation8 + $0x28] sm:$0xff]
    %v218 = vld [vmem:[#allocation8 + $0x30] sm:$0xff]
    %v219 = vld [vmem:[#allocation8 + $0x38] sm:$0xff]
    %v220 = vld [vmem:[#allocation8 + $0x40] sm:$0xff]
    %v221 = vld [vmem:[#allocation8 + $0x48] sm:$0xff]
    %v222 = vld [vmem:[#allocation8 + $0x50] sm:$0xff]
    %v223 = vld [vmem:[#allocation8 + $0x58] sm:$0xff]
    %v224 = vld [vmem:[#allocation8 + $0x60] sm:$0xff]
    %v225 = vld [vmem:[#allocation8 + $0x68] sm:$0xff]
    %v226 = vld [vmem:[#allocation8 + $0x70] sm:$0xff]
    %v227 = vld [vmem:[#allocation8 + $0x78] sm:$0xff]
    %228 = vmatprep.subr.mxu0 0.0
    %229 = vmatpush1.msra.mxu0 %v212
    %230 = vmatprep.subr.mxu0 0.0
    %231 = vmatpush1.msra.mxu0 %v213
    %232 = vmatprep.subr.mxu0 0.0
    %233 = vmatpush1.msra.mxu0 %v214
    %234 = vmatprep.subr.mxu0 0.0
    %235 = vmatpush1.msra.mxu0 %v215
    %236 = vmatprep.subr.mxu0 0.0
    %237 = vmatpush1.msra.mxu0 %v216
    %238 = vmatprep.subr.mxu0 0.0
    %239 = vmatpush1.msra.mxu0 %v217
    %240 = vmatprep.subr.mxu0 0.0
    %241 = vmatpush1.msra.mxu0 %v218
    %242 = vmatprep.subr.mxu0 0.0
    %243 = vmatpush1.msra.mxu0 %v219
    %244 = vmatprep.subr.mxu0 0.0
    %245 = vmatpush1.msra.mxu0 %v220
    %246 = vmatprep.subr.mxu0 0.0
    %247 = vmatpush1.msra.mxu0 %v221
    %248 = vmatprep.subr.mxu0 0.0
    %249 = vmatpush1.msra.mxu0 %v222
    %250 = vmatprep.subr.mxu0 0.0
    %251 = vmatpush1.msra.mxu0 %v223
    %252 = vmatprep.subr.mxu0 0.0
    %253 = vmatpush1.msra.mxu0 %v224
    %254 = vmatprep.subr.mxu0 0.0
    %255 = vmatpush1.msra.mxu0 %v225
    %256 = vmatprep.subr.mxu0 0.0
    %257 = vmatpush1.msra.mxu0 %v226
    %258 = vmatprep.subr.mxu0 0.0
    %259 = vmatpush1.msra.mxu0 %v227
    %260 = vmatprep.subr.mxu0 0.0
    %261 = vmatpush1.msra.mxu0 0.0
    %262 = vmatprep.subr.mxu0 0.0
    %263 = vmatpush1.msra.mxu0 0.0
    %264 = vmatprep.subr.mxu0 0.0
    %265 = vmatpush1.msra.mxu0 0.0
    %266 = vmatprep.subr.mxu0 0.0
    %267 = vmatpush1.msra.mxu0 0.0
    %268 = vmatprep.subr.mxu0 0.0
    %269 = vmatpush1.msra.mxu0 0.0
    %270 = vmatprep.subr.mxu0 0.0
    %271 = vmatpush1.msra.mxu0 0.0
    %272 = vmatprep.subr.mxu0 0.0
    %273 = vmatpush1.msra.mxu0 0.0
    %274 = vmatprep.subr.mxu0 0.0
    %275 = vmatpush1.msra.mxu0 0.0
    %276 = vmatprep.subr.mxu0 0.0
    %277 = vmatpush1.msra.mxu0 0.0
    %278 = vmatprep.subr.mxu0 0.0
    %279 = vmatpush1.msra.mxu0 0.0
    %280 = vmatprep.subr.mxu0 0.0
    %281 = vmatpush1.msra.mxu0 0.0
    %282 = vmatprep.subr.mxu0 0.0
    %283 = vmatpush1.msra.mxu0 0.0
    %284 = vmatprep.subr.mxu0 0.0
    %285 = vmatpush1.msra.mxu0 0.0
    %286 = vmatprep.subr.mxu0 0.0
    %287 = vmatpush1.msra.mxu0 0.0
    %288 = vmatprep.subr.mxu0 0.0
    %289 = vmatpush1.msra.mxu0 0.0
    %290 = vmatprep.subr.mxu0 0.0
    %291 = vmatpush1.msra.mxu0 0.0
    %292 = vmatprep.mubr.f32.mxu0 0.0
    %293 = vmatmul.mubr.f32.gmra.mrb[0].mxu0 %v110
    %v294 = vpop.f32.mrb[0].mxu0
    %v295 = vadd.f32 0.0, %v294
    %v296 = vpop.f32.mrb[0].mxu0
    %297 = vmatprep.mubr.f32.mxu0 0.0
    %298 = vmatmul.mubr.f32.gmra.mrb[0].mxu0 %v111
    %v299 = vpop.f32.mrb[0].mxu0
    %v300 = vadd.f32 0.0, %v299
    %v301 = vpop.f32.mrb[0].mxu0
    %302 = vmatprep.mubr.f32.mxu0 0.0
    %303 = vmatmul.mubr.f32.gmra.mrb[0].mxu0 %v112
    %v304 = vpop.f32.mrb[0].mxu0
    %v305 = vadd.f32 0.0, %v304
    %v306 = vpop.f32.mrb[0].mxu0
    %307 = vmatprep.mubr.f32.mxu0 0.0
    %308 = vmatmul.mubr.f32.gmra.mrb[0].mxu0 %v113
    %v309 = vpop.f32.mrb[0].mxu0
    %v310 = vadd.f32 0.0, %v309
    %v311 = vpop.f32.mrb[0].mxu0
    %312 = vmatprep.mubr.f32.mxu0 0.0
    %313 = vmatmul.mubr.f32.gmra.mrb[0].mxu0 %v114
    %v314 = vpop.f32.mrb[0].mxu0
    %v315 = vadd.f32 0.0, %v314
    %v316 = vpop.f32.mrb[0].mxu0
    %317 = vmatprep.mubr.f32.mxu0 0.0
    %318 = vmatmul.mubr.f32.gmra.mrb[0].mxu0 %v115
    %v319 = vpop.f32.mrb[0].mxu0
    %v320 = vadd.f32 0.0, %v319
    %v321 = vpop.f32.mrb[0].mxu0
    %322 = vmatprep.mubr.f32.mxu0 0.0
    %323 = vmatmul.mubr.f32.gmra.mrb[0].mxu0 %v116
    %v324 = vpop.f32.mrb[0].mxu0
    %v325 = vadd.f32 0.0, %v324
    %v326 = vpop.f32.mrb[0].mxu0
    %327 = vmatprep.mubr.f32.mxu0 0.0
    %328 = vmatmul.mubr.f32.gmra.mrb[0].mxu0 %v117
    %v329 = vpop.f32.mrb[0].mxu0
    %v330 = vadd.f32 0.0, %v329
    %v331 = vpop.f32.mrb[0].mxu0
    %332 = vmatprep.mubr.f32.mxu0 0.0
    %333 = vmatmul.mubr.f32.gmra.mrb[0].mxu0 %v118
    %v334 = vpop.f32.mrb[0].mxu0
    %v335 = vadd.f32 0.0, %v334
    %v336 = vpop.f32.mrb[0].mxu0
    %337 = vmatprep.mubr.f32.mxu0 0.0
    %338 = vmatmul.mubr.f32.gmra.mrb[0].mxu0 %v119
    %v339 = vpop.f32.mrb[0].mxu0
    %v340 = vadd.f32 0.0, %v339
    %v341 = vpop.f32.mrb[0].mxu0
    %342 = vmatprep.mubr.f32.mxu0 0.0
    %343 = vmatmul.mubr.f32.gmra.mrb[0].mxu0 %v120
    %v344 = vpop.f32.mrb[0].mxu0
    %v345 = vadd.f32 0.0, %v344
    %v346 = vpop.f32.mrb[0].mxu0
    %347 = vmatprep.mubr.f32.mxu0 0.0
    %348 = vmatmul.mubr.f32.gmra.mrb[0].mxu0 %v121
    %v349 = vpop.f32.mrb[0].mxu0
    %v350 = vadd.f32 0.0, %v349
    %v351 = vpop.f32.mrb[0].mxu0
    %352 = vmatprep.mubr.f32.mxu0 0.0
    %353 = vmatmul.mubr.f32.gmra.mrb[0].mxu0 %v122
    %v354 = vpop.f32.mrb[0].mxu0
    %v355 = vadd.f32 0.0, %v354
    %v356 = vpop.f32.mrb[0].mxu0
    %357 = vmatprep.mubr.f32.mxu0 0.0
    %358 = vmatmul.mubr.f32.gmra.mrb[0].mxu0 %v123
    %v359 = vpop.f32.mrb[0].mxu0
    %v360 = vadd.f32 0.0, %v359
    %v361 = vpop.f32.mrb[0].mxu0
    %362 = vmatprep.mubr.f32.mxu0 0.0
    %363 = vmatmul.mubr.f32.gmra.mrb[0].mxu0 %v124
    %v364 = vpop.f32.mrb[0].mxu0
    %v365 = vadd.f32 0.0, %v364
    %v366 = vpop.f32.mrb[0].mxu0
    %367 = vmatprep.mubr.f32.mxu0 0.0
    %368 = vmatmul.mubr.f32.gmra.mrb[0].mxu0 %v125
    %v369 = vpop.f32.mrb[0].mxu0
    %v370 = vadd.f32 0.0, %v369
    %v371 = vpop.f32.mrb[0].mxu0
    %372 = vdwg.mxu0
    %v373 = vld [vmem:[%s4] sm:$0x1]
    %v375 = vlaneseq
    %v376 = vshrl.u32 %v375, 7
    %v377 = vsub.s32 0, %v376
    %v378 = vrot.slane %v373, %v377
    %380 = vmatprep.subr.mxu0 0.0
    %381 = vmatpush1.msra.mxu0 %v295
    %382 = vmatprep.subr.mxu0 0.0
    %383 = vmatpush1.msra.mxu0 %v300
    %384 = vmatprep.subr.mxu0 0.0
    %385 = vmatpush1.msra.mxu0 %v305
    %386 = vmatprep.subr.mxu0 0.0
    %387 = vmatpush1.msra.mxu0 %v310
    %388 = vmatprep.subr.mxu0 0.0
    %389 = vmatpush1.msra.mxu0 %v315
    %390 = vmatprep.subr.mxu0 0.0
    %391 = vmatpush1.msra.mxu0 %v320
    %392 = vmatprep.subr.mxu0 0.0
    %393 = vmatpush1.msra.mxu0 %v325
    %394 = vmatprep.subr.mxu0 0.0
    %395 = vmatpush1.msra.mxu0 %v330
    %396 = vmatprep.subr.mxu0 0.0
    %397 = vmatpush1.msra.mxu0 %v335
    %398 = vmatprep.subr.mxu0 0.0
    %399 = vmatpush1.msra.mxu0 %v340
    %400 = vmatprep.subr.mxu0 0.0
    %401 = vmatpush1.msra.mxu0 %v345
    %402 = vmatprep.subr.mxu0 0.0
    %403 = vmatpush1.msra.mxu0 %v350
    %404 = vmatprep.subr.mxu0 0.0
    %405 = vmatpush1.msra.mxu0 %v355
    %406 = vmatprep.subr.mxu0 0.0
    %407 = vmatpush1.msra.mxu0 %v360
    %408 = vmatprep.subr.mxu0 0.0
    %409 = vmatpush1.msra.mxu0 %v365
    %410 = vmatprep.subr.mxu0 0.0
    %411 = vmatpush1.msra.mxu0 %v370
    %412 = vmatprep.subr.mxu0 0.0
    %413 = vmatpush1.msra.mxu0 0.0
    %414 = vmatprep.subr.mxu0 0.0
    %415 = vmatpush1.msra.mxu0 0.0
    %416 = vmatprep.subr.mxu0 0.0
    %417 = vmatpush1.msra.mxu0 0.0
    %418 = vmatprep.subr.mxu0 0.0
    %419 = vmatpush1.msra.mxu0 0.0
    %420 = vmatprep.subr.mxu0 0.0
    %421 = vmatpush1.msra.mxu0 0.0
    %422 = vmatprep.subr.mxu0 0.0
    %423 = vmatpush1.msra.mxu0 0.0
    %424 = vmatprep.subr.mxu0 0.0
    %425 = vmatpush1.msra.mxu0 0.0
    %426 = vmatprep.subr.mxu0 0.0
    %427 = vmatpush1.msra.mxu0 0.0
    %428 = vmatprep.subr.mxu0 0.0
    %429 = vmatpush1.msra.mxu0 0.0
    %430 = vmatprep.subr.mxu0 0.0
    %431 = vmatpush1.msra.mxu0 0.0
    %432 = vmatprep.subr.mxu0 0.0
    %433 = vmatpush1.msra.mxu0 0.0
    %434 = vmatprep.subr.mxu0 0.0
    %435 = vmatpush1.msra.mxu0 0.0
    %436 = vmatprep.subr.mxu0 0.0
    %437 = vmatpush1.msra.mxu0 0.0
    %438 = vmatprep.subr.mxu0 0.0
    %439 = vmatpush1.msra.mxu0 0.0
    %440 = vmatprep.subr.mxu0 0.0
    %441 = vmatpush1.msra.mxu0 0.0
    %442 = vmatprep.subr.mxu0 0.0
    %443 = vmatpush1.msra.mxu0 0.0
    %444 = vmatprep.mubr.f32.mxu0 0.0
    %445 = vmatmul.mubr.f32.gmra.mrb[0].mxu0 %v93
    %v446 = vpop.f32.mrb[0].mxu0
    %v447 = vadd.f32 %v378, %v446
    %v448 = vpop.f32.mrb[0].mxu0
    %449 = vmatprep.mubr.f32.mxu0 0.0
    %450 = vmatmul.mubr.f32.gmra.mrb[0].mxu0 %v94
    %v451 = vpop.f32.mrb[0].mxu0
    %v452 = vadd.f32 %v378, %v451
    %v453 = vpop.f32.mrb[0].mxu0
    %454 = vmatprep.mubr.f32.mxu0 0.0
    %455 = vmatmul.mubr.f32.gmra.mrb[0].mxu0 %v95
    %v456 = vpop.f32.mrb[0].mxu0
    %v457 = vadd.f32 %v378, %v456
    %v458 = vpop.f32.mrb[0].mxu0
    %459 = vmatprep.mubr.f32.mxu0 0.0
    %460 = vmatmul.mubr.f32.gmra.mrb[0].mxu0 %v96
    %v461 = vpop.f32.mrb[0].mxu0
    %v462 = vadd.f32 %v378, %v461
    %v463 = vpop.f32.mrb[0].mxu0
    %464 = vmatprep.mubr.f32.mxu0 0.0
    %465 = vmatmul.mubr.f32.gmra.mrb[0].mxu0 %v97
    %v466 = vpop.f32.mrb[0].mxu0
    %v467 = vadd.f32 %v378, %v466
    %v468 = vpop.f32.mrb[0].mxu0
    %469 = vmatprep.mubr.f32.mxu0 0.0
    %470 = vmatmul.mubr.f32.gmra.mrb[0].mxu0 %v98
    %v471 = vpop.f32.mrb[0].mxu0
    %v472 = vadd.f32 %v378, %v471
    %v473 = vpop.f32.mrb[0].mxu0
    %474 = vmatprep.mubr.f32.mxu0 0.0
    %475 = vmatmul.mubr.f32.gmra.mrb[0].mxu0 %v99
    %v476 = vpop.f32.mrb[0].mxu0
    %v477 = vadd.f32 %v378, %v476
    %v478 = vpop.f32.mrb[0].mxu0
    %479 = vmatprep.mubr.f32.mxu0 0.0
    %480 = vmatmul.mubr.f32.gmra.mrb[0].mxu0 %v100
    %v481 = vpop.f32.mrb[0].mxu0
    %v482 = vadd.f32 %v378, %v481
    %v483 = vpop.f32.mrb[0].mxu0
    %484 = vmatprep.mubr.f32.mxu0 0.0
    %485 = vmatmul.mubr.f32.gmra.mrb[0].mxu0 %v101
    %v486 = vpop.f32.mrb[0].mxu0
    %v487 = vadd.f32 %v378, %v486
    %v488 = vpop.f32.mrb[0].mxu0
    %489 = vmatprep.mubr.f32.mxu0 0.0
    %490 = vmatmul.mubr.f32.gmra.mrb[0].mxu0 %v102
    %v491 = vpop.f32.mrb[0].mxu0
    %v492 = vadd.f32 %v378, %v491
    %v493 = vpop.f32.mrb[0].mxu0
    %494 = vmatprep.mubr.f32.mxu0 0.0
    %495 = vmatmul.mubr.f32.gmra.mrb[0].mxu0 %v103
    %v496 = vpop.f32.mrb[0].mxu0
    %v497 = vadd.f32 %v378, %v496
    %v498 = vpop.f32.mrb[0].mxu0
    %499 = vmatprep.mubr.f32.mxu0 0.0
    %500 = vmatmul.mubr.f32.gmra.mrb[0].mxu0 %v104
    %v501 = vpop.f32.mrb[0].mxu0
    %v502 = vadd.f32 %v378, %v501
    %v503 = vpop.f32.mrb[0].mxu0
    %504 = vmatprep.mubr.f32.mxu0 0.0
    %505 = vmatmul.mubr.f32.gmra.mrb[0].mxu0 %v105
    %v506 = vpop.f32.mrb[0].mxu0
    %v507 = vadd.f32 %v378, %v506
    %v508 = vpop.f32.mrb[0].mxu0
    %509 = vmatprep.mubr.f32.mxu0 0.0
    %510 = vmatmul.mubr.f32.gmra.mrb[0].mxu0 %v106
    %v511 = vpop.f32.mrb[0].mxu0
    %v512 = vadd.f32 %v378, %v511
    %v513 = vpop.f32.mrb[0].mxu0
    %514 = vmatprep.mubr.f32.mxu0 0.0
    %515 = vmatmul.mubr.f32.gmra.mrb[0].mxu0 %v107
    %v516 = vpop.f32.mrb[0].mxu0
    %v517 = vadd.f32 %v378, %v516
    %v518 = vpop.f32.mrb[0].mxu0
    %519 = vmatprep.mubr.f32.mxu0 0.0
    %520 = vmatmul.mubr.f32.gmra.mrb[0].mxu0 %v108
    %v521 = vpop.f32.mrb[0].mxu0
    %v522 = vadd.f32 %v378, %v521
    %v523 = vpop.f32.mrb[0].mxu0
    %524 = vdwg.mxu0
    %v525 = vmax.f32 %v447, 0.0
    %v526 = vmax.f32 %v452, 0.0
    %v527 = vmax.f32 %v457, 0.0
    %v528 = vmax.f32 %v462, 0.0
    %v529 = vmax.f32 %v467, 0.0
    %v530 = vmax.f32 %v472, 0.0
    %v531 = vmax.f32 %v477, 0.0
    %v532 = vmax.f32 %v482, 0.0
    %v533 = vmax.f32 %v487, 0.0
    %v534 = vmax.f32 %v492, 0.0
    %v535 = vmax.f32 %v497, 0.0
    %v536 = vmax.f32 %v502, 0.0
    %v537 = vmax.f32 %v507, 0.0
    %v538 = vmax.f32 %v512, 0.0
    %v539 = vmax.f32 %v517, 0.0
    %v540 = vmax.f32 %v522, 0.0
    %541 = vmatprep.subr.mxu0 0.0
    %542 = vmatpush1.msra.mxu0 %v525
    %543 = vmatprep.subr.mxu0 0.0
    %544 = vmatpush1.msra.mxu0 %v526
    %545 = vmatprep.subr.mxu0 0.0
    %546 = vmatpush1.msra.mxu0 %v527
    %547 = vmatprep.subr.mxu0 0.0
    %548 = vmatpush1.msra.mxu0 %v528
    %549 = vmatprep.subr.mxu0 0.0
    %550 = vmatpush1.msra.mxu0 %v529
    %551 = vmatprep.subr.mxu0 0.0
    %552 = vmatpush1.msra.mxu0 %v530
    %553 = vmatprep.subr.mxu0 0.0
    %554 = vmatpush1.msra.mxu0 %v531
    %555 = vmatprep.subr.mxu0 0.0
    %556 = vmatpush1.msra.mxu0 %v532
    %557 = vmatprep.subr.mxu0 0.0
    %558 = vmatpush1.msra.mxu0 %v533
    %559 = vmatprep.subr.mxu0 0.0
    %560 = vmatpush1.msra.mxu0 %v534
    %561 = vmatprep.subr.mxu0 0.0
    %562 = vmatpush1.msra.mxu0 %v535
    %563 = vmatprep.subr.mxu0 0.0
    %564 = vmatpush1.msra.mxu0 %v536
    %565 = vmatprep.subr.mxu0 0.0
    %566 = vmatpush1.msra.mxu0 %v537
    %567 = vmatprep.subr.mxu0 0.0
    %568 = vmatpush1.msra.mxu0 %v538
    %569 = vmatprep.subr.mxu0 0.0
    %570 = vmatpush1.msra.mxu0 %v539
    %571 = vmatprep.subr.mxu0 0.0
    %572 = vmatpush1.msra.mxu0 %v540
    %573 = vmatprep.subr.mxu0 0.0
    %574 = vmatpush1.msra.mxu0 0.0
    %575 = vmatprep.subr.mxu0 0.0
    %576 = vmatpush1.msra.mxu0 0.0
    %577 = vmatprep.subr.mxu0 0.0
    %578 = vmatpush1.msra.mxu0 0.0
    %579 = vmatprep.subr.mxu0 0.0
    %580 = vmatpush1.msra.mxu0 0.0
    %581 = vmatprep.subr.mxu0 0.0
    %582 = vmatpush1.msra.mxu0 0.0
    %583 = vmatprep.subr.mxu0 0.0
    %584 = vmatpush1.msra.mxu0 0.0
    %585 = vmatprep.subr.mxu0 0.0
    %586 = vmatpush1.msra.mxu0 0.0
    %587 = vmatprep.subr.mxu0 0.0
    %588 = vmatpush1.msra.mxu0 0.0
    %589 = vmatprep.subr.mxu0 0.0
    %590 = vmatpush1.msra.mxu0 0.0
    %591 = vmatprep.subr.mxu0 0.0
    %592 = vmatpush1.msra.mxu0 0.0
    %593 = vmatprep.subr.mxu0 0.0
    %594 = vmatpush1.msra.mxu0 0.0
    %595 = vmatprep.subr.mxu0 0.0
    %596 = vmatpush1.msra.mxu0 0.0
    %597 = vmatprep.subr.mxu0 0.0
    %598 = vmatpush1.msra.mxu0 0.0
    %599 = vmatprep.subr.mxu0 0.0
    %600 = vmatpush1.msra.mxu0 0.0
    %601 = vmatprep.subr.mxu0 0.0
    %602 = vmatpush1.msra.mxu0 0.0
    %603 = vmatprep.subr.mxu0 0.0
    %604 = vmatpush1.msra.mxu0 0.0
    %605 = vmatprep.mubr.f32.mxu0 0.0
    %606 = vmatmul.mubr.f32.gmra.mrb[0].mxu0 %v109
    %v607 = vpop.f32.mrb[0].mxu0
    %v608 = vadd.f32 0.0, %v607
    %v609 = vpop.f32.mrb[0].mxu0
    %610 = vdwg.mxu0
    %s611 = scalar_lea.vmem [#allocation10], 128
    %v612 = vld [vmem:[%s611] sm:$0xff]
    %v613 = vld [vmem:[%s611 + $0x8] sm:$0xff]
    %v614 = vld [vmem:[%s611 + $0x10] sm:$0xff]
    %v615 = vld [vmem:[%s611 + $0x18] sm:$0xff]
    %v616 = vld [vmem:[%s611 + $0x20] sm:$0xff]
    %v617 = vld [vmem:[%s611 + $0x28] sm:$0xff]
    %v618 = vld [vmem:[%s611 + $0x30] sm:$0xff]
    %v619 = vld [vmem:[%s611 + $0x38] sm:$0xff]
    %v620 = vld [vmem:[%s611 + $0x40] sm:$0xff]
    %v621 = vld [vmem:[%s611 + $0x48] sm:$0xff]
    %v622 = vld [vmem:[%s611 + $0x50] sm:$0xff]
    %v623 = vld [vmem:[%s611 + $0x58] sm:$0xff]
    %v624 = vld [vmem:[%s611 + $0x60] sm:$0xff]
    %v625 = vld [vmem:[%s611 + $0x68] sm:$0xff]
    %v626 = vld [vmem:[%s611 + $0x70] sm:$0xff]
    %v627 = vld [vmem:[%s611 + $0x78] sm:$0xff]
    %628 = vmatprep.subr.mxu0 0.0
    %629 = vmatpush1.msra.mxu0 %v612
    %630 = vmatprep.subr.mxu0 0.0
    %631 = vmatpush1.msra.mxu0 %v613
    %632 = vmatprep.subr.mxu0 0.0
    %633 = vmatpush1.msra.mxu0 %v614
    %634 = vmatprep.subr.mxu0 0.0
    %635 = vmatpush1.msra.mxu0 %v615
    %636 = vmatprep.subr.mxu0 0.0
    %637 = vmatpush1.msra.mxu0 %v616
    %638 = vmatprep.subr.mxu0 0.0
    %639 = vmatpush1.msra.mxu0 %v617
    %640 = vmatprep.subr.mxu0 0.0
    %641 = vmatpush1.msra.mxu0 %v618
    %642 = vmatprep.subr.mxu0 0.0
    %643 = vmatpush1.msra.mxu0 %v619
    %644 = vmatprep.subr.mxu0 0.0
    %645 = vmatpush1.msra.mxu0 %v620
    %646 = vmatprep.subr.mxu0 0.0
    %647 = vmatpush1.msra.mxu0 %v621
    %648 = vmatprep.subr.mxu0 0.0
    %649 = vmatpush1.msra.mxu0 %v622
    %650 = vmatprep.subr.mxu0 0.0
    %651 = vmatpush1.msra.mxu0 %v623
    %652 = vmatprep.subr.mxu0 0.0
    %653 = vmatpush1.msra.mxu0 %v624
    %654 = vmatprep.subr.mxu0 0.0
    %655 = vmatpush1.msra.mxu0 %v625
    %656 = vmatprep.subr.mxu0 0.0
    %657 = vmatpush1.msra.mxu0 %v626
    %658 = vmatprep.subr.mxu0 0.0
    %659 = vmatpush1.msra.mxu0 %v627
    %660 = vmatprep.subr.mxu0 0.0
    %661 = vmatpush1.msra.mxu0 0.0
    %662 = vmatprep.subr.mxu0 0.0
    %663 = vmatpush1.msra.mxu0 0.0
    %664 = vmatprep.subr.mxu0 0.0
    %665 = vmatpush1.msra.mxu0 0.0
    %666 = vmatprep.subr.mxu0 0.0
    %667 = vmatpush1.msra.mxu0 0.0
    %668 = vmatprep.subr.mxu0 0.0
    %669 = vmatpush1.msra.mxu0 0.0
    %670 = vmatprep.subr.mxu0 0.0
    %671 = vmatpush1.msra.mxu0 0.0
    %672 = vmatprep.subr.mxu0 0.0
    %673 = vmatpush1.msra.mxu0 0.0
    %674 = vmatprep.subr.mxu0 0.0
    %675 = vmatpush1.msra.mxu0 0.0
    %676 = vmatprep.subr.mxu0 0.0
    %677 = vmatpush1.msra.mxu0 0.0
    %678 = vmatprep.subr.mxu0 0.0
    %679 = vmatpush1.msra.mxu0 0.0
    %680 = vmatprep.subr.mxu0 0.0
    %681 = vmatpush1.msra.mxu0 0.0
    %682 = vmatprep.subr.mxu0 0.0
    %683 = vmatpush1.msra.mxu0 0.0
    %684 = vmatprep.subr.mxu0 0.0
    %685 = vmatpush1.msra.mxu0 0.0
    %686 = vmatprep.subr.mxu0 0.0
    %687 = vmatpush1.msra.mxu0 0.0
    %688 = vmatprep.subr.mxu0 0.0
    %689 = vmatpush1.msra.mxu0 0.0
    %690 = vmatprep.subr.mxu0 0.0
    %691 = vmatpush1.msra.mxu0 0.0
    %692 = vmatprep.mubr.f32.mxu0 0.0
    %693 = vmatmul.mubr.f32.gmra.mrb[0].mxu0 %v608
    %v694 = vpop.f32.mrb[0].mxu0
    %v695 = vadd.f32 0.0, %v694
    %v696 = vpop.f32.mrb[0].mxu0
    %697 = vdwg.mxu0
    %698 = vmatprep.subr.mxu0 0.0
    %699 = vmatpush1.msra.mxu0 %v196
    %700 = vmatprep.subr.mxu0 0.0
    %701 = vmatpush1.msra.mxu0 %v197
    %702 = vmatprep.subr.mxu0 0.0
    %703 = vmatpush1.msra.mxu0 %v198
    %704 = vmatprep.subr.mxu0 0.0
    %705 = vmatpush1.msra.mxu0 %v199
    %706 = vmatprep.subr.mxu0 0.0
    %707 = vmatpush1.msra.mxu0 %v200
    %708 = vmatprep.subr.mxu0 0.0
    %709 = vmatpush1.msra.mxu0 %v201
    %710 = vmatprep.subr.mxu0 0.0
    %711 = vmatpush1.msra.mxu0 %v202
    %712 = vmatprep.subr.mxu0 0.0
    %713 = vmatpush1.msra.mxu0 %v203
    %714 = vmatprep.subr.mxu0 0.0
    %715 = vmatpush1.msra.mxu0 %v204
    %716 = vmatprep.subr.mxu0 0.0
    %717 = vmatpush1.msra.mxu0 %v205
    %718 = vmatprep.subr.mxu0 0.0
    %719 = vmatpush1.msra.mxu0 %v206
    %720 = vmatprep.subr.mxu0 0.0
    %721 = vmatpush1.msra.mxu0 %v207
    %722 = vmatprep.subr.mxu0 0.0
    %723 = vmatpush1.msra.mxu0 %v208
    %724 = vmatprep.subr.mxu0 0.0
    %725 = vmatpush1.msra.mxu0 %v209
    %726 = vmatprep.subr.mxu0 0.0
    %727 = vmatpush1.msra.mxu0 %v210
    %728 = vmatprep.subr.mxu0 0.0
    %729 = vmatpush1.msra.mxu0 %v211
    %730 = vmatprep.subr.mxu0 0.0
    %731 = vmatpush1.msra.mxu0 0.0
    %732 = vmatprep.subr.mxu0 0.0
    %733 = vmatpush1.msra.mxu0 0.0
    %734 = vmatprep.subr.mxu0 0.0
    %735 = vmatpush1.msra.mxu0 0.0
    %736 = vmatprep.subr.mxu0 0.0
    %737 = vmatpush1.msra.mxu0 0.0
    %738 = vmatprep.subr.mxu0 0.0
    %739 = vmatpush1.msra.mxu0 0.0
    %740 = vmatprep.subr.mxu0 0.0
    %741 = vmatpush1.msra.mxu0 0.0
    %742 = vmatprep.subr.mxu0 0.0
    %743 = vmatpush1.msra.mxu0 0.0
    %744 = vmatprep.subr.mxu0 0.0
    %745 = vmatpush1.msra.mxu0 0.0
    %746 = vmatprep.subr.mxu0 0.0
    %747 = vmatpush1.msra.mxu0 0.0
    %748 = vmatprep.subr.mxu0 0.0
    %749 = vmatpush1.msra.mxu0 0.0
    %750 = vmatprep.subr.mxu0 0.0
    %751 = vmatpush1.msra.mxu0 0.0
    %752 = vmatprep.subr.mxu0 0.0
    %753 = vmatpush1.msra.mxu0 0.0
    %754 = vmatprep.subr.mxu0 0.0
    %755 = vmatpush1.msra.mxu0 0.0
    %756 = vmatprep.subr.mxu0 0.0
    %757 = vmatpush1.msra.mxu0 0.0
    %758 = vmatprep.subr.mxu0 0.0
    %759 = vmatpush1.msra.mxu0 0.0
    %760 = vmatprep.subr.mxu0 0.0
    %761 = vmatpush1.msra.mxu0 0.0
    %762 = vmatprep.mubr.f32.mxu0 0.0
    %763 = vmatmul.mubr.f32.gmra.mrb[0].mxu0 %v193
    %v764 = vpop.f32.mrb[0].mxu0
    %v765 = vadd.f32 %v695, %v764
    %v766 = vpop.f32.mrb[0].mxu0
    %767 = vdwg.mxu0
    %s768 = scalar_lea.vmem [#allocation8], 128
    %v769 = vld [vmem:[%s768] sm:$0xff]
    %v770 = vld [vmem:[%s768 + $0x8] sm:$0xff]
    %v771 = vld [vmem:[%s768 + $0x10] sm:$0xff]
    %v772 = vld [vmem:[%s768 + $0x18] sm:$0xff]
    %v773 = vld [vmem:[%s768 + $0x20] sm:$0xff]
    %v774 = vld [vmem:[%s768 + $0x28] sm:$0xff]
    %v775 = vld [vmem:[%s768 + $0x30] sm:$0xff]
    %v776 = vld [vmem:[%s768 + $0x38] sm:$0xff]
    %v777 = vld [vmem:[%s768 + $0x40] sm:$0xff]
    %v778 = vld [vmem:[%s768 + $0x48] sm:$0xff]
    %v779 = vld [vmem:[%s768 + $0x50] sm:$0xff]
    %v780 = vld [vmem:[%s768 + $0x58] sm:$0xff]
    %v781 = vld [vmem:[%s768 + $0x60] sm:$0xff]
    %v782 = vld [vmem:[%s768 + $0x68] sm:$0xff]
    %v783 = vld [vmem:[%s768 + $0x70] sm:$0xff]
    %v784 = vld [vmem:[%s768 + $0x78] sm:$0xff]
    %785 = vmatprep.subr.mxu0 0.0
    %786 = vmatpush1.msra.mxu0 %v769
    %787 = vmatprep.subr.mxu0 0.0
    %788 = vmatpush1.msra.mxu0 %v770
    %789 = vmatprep.subr.mxu0 0.0
    %790 = vmatpush1.msra.mxu0 %v771
    %791 = vmatprep.subr.mxu0 0.0
    %792 = vmatpush1.msra.mxu0 %v772
    %793 = vmatprep.subr.mxu0 0.0
    %794 = vmatpush1.msra.mxu0 %v773
    %795 = vmatprep.subr.mxu0 0.0
    %796 = vmatpush1.msra.mxu0 %v774
    %797 = vmatprep.subr.mxu0 0.0
    %798 = vmatpush1.msra.mxu0 %v775
    %799 = vmatprep.subr.mxu0 0.0
    %800 = vmatpush1.msra.mxu0 %v776
    %801 = vmatprep.subr.mxu0 0.0
    %802 = vmatpush1.msra.mxu0 %v777
    %803 = vmatprep.subr.mxu0 0.0
    %804 = vmatpush1.msra.mxu0 %v778
    %805 = vmatprep.subr.mxu0 0.0
    %806 = vmatpush1.msra.mxu0 %v779
    %807 = vmatprep.subr.mxu0 0.0
    %808 = vmatpush1.msra.mxu0 %v780
    %809 = vmatprep.subr.mxu0 0.0
    %810 = vmatpush1.msra.mxu0 %v781
    %811 = vmatprep.subr.mxu0 0.0
    %812 = vmatpush1.msra.mxu0 %v782
    %813 = vmatprep.subr.mxu0 0.0
    %814 = vmatpush1.msra.mxu0 %v783
    %815 = vmatprep.subr.mxu0 0.0
    %816 = vmatpush1.msra.mxu0 %v784
    %817 = vmatprep.subr.mxu0 0.0
    %818 = vmatpush1.msra.mxu0 0.0
    %819 = vmatprep.subr.mxu0 0.0
    %820 = vmatpush1.msra.mxu0 0.0
    %821 = vmatprep.subr.mxu0 0.0
    %822 = vmatpush1.msra.mxu0 0.0
    %823 = vmatprep.subr.mxu0 0.0
    %824 = vmatpush1.msra.mxu0 0.0
    %825 = vmatprep.subr.mxu0 0.0
    %826 = vmatpush1.msra.mxu0 0.0
    %827 = vmatprep.subr.mxu0 0.0
    %828 = vmatpush1.msra.mxu0 0.0
    %829 = vmatprep.subr.mxu0 0.0
    %830 = vmatpush1.msra.mxu0 0.0
    %831 = vmatprep.subr.mxu0 0.0
    %832 = vmatpush1.msra.mxu0 0.0
    %833 = vmatprep.subr.mxu0 0.0
    %834 = vmatpush1.msra.mxu0 0.0
    %835 = vmatprep.subr.mxu0 0.0
    %836 = vmatpush1.msra.mxu0 0.0
    %837 = vmatprep.subr.mxu0 0.0
    %838 = vmatpush1.msra.mxu0 0.0
    %839 = vmatprep.subr.mxu0 0.0
    %840 = vmatpush1.msra.mxu0 0.0
    %841 = vmatprep.subr.mxu0 0.0
    %842 = vmatpush1.msra.mxu0 0.0
    %843 = vmatprep.subr.mxu0 0.0
    %844 = vmatpush1.msra.mxu0 0.0
    %845 = vmatprep.subr.mxu0 0.0
    %846 = vmatpush1.msra.mxu0 0.0
    %847 = vmatprep.subr.mxu0 0.0
    %848 = vmatpush1.msra.mxu0 0.0
    %849 = vmatprep.mubr.f32.mxu0 0.0
    %850 = vmatmul.mubr.f32.gmra.mrb[0].mxu0 %v525
    %v851 = vpop.f32.mrb[0].mxu0
    %v852 = vadd.f32 0.0, %v851
    %v853 = vpop.f32.mrb[0].mxu0
    %854 = vmatprep.mubr.f32.mxu0 0.0
    %855 = vmatmul.mubr.f32.gmra.mrb[0].mxu0 %v526
    %v856 = vpop.f32.mrb[0].mxu0
    %v857 = vadd.f32 0.0, %v856
    %v858 = vpop.f32.mrb[0].mxu0
    %859 = vmatprep.mubr.f32.mxu0 0.0
    %860 = vmatmul.mubr.f32.gmra.mrb[0].mxu0 %v527
    %v861 = vpop.f32.mrb[0].mxu0
    %v862 = vadd.f32 0.0, %v861
    %v863 = vpop.f32.mrb[0].mxu0
    %864 = vmatprep.mubr.f32.mxu0 0.0
    %865 = vmatmul.mubr.f32.gmra.mrb[0].mxu0 %v528
    %v866 = vpop.f32.mrb[0].mxu0
    %v867 = vadd.f32 0.0, %v866
    %v868 = vpop.f32.mrb[0].mxu0
    %869 = vmatprep.mubr.f32.mxu0 0.0
    %870 = vmatmul.mubr.f32.gmra.mrb[0].mxu0 %v529
    %v871 = vpop.f32.mrb[0].mxu0
    %v872 = vadd.f32 0.0, %v871
    %v873 = vpop.f32.mrb[0].mxu0
    %874 = vmatprep.mubr.f32.mxu0 0.0
    %875 = vmatmul.mubr.f32.gmra.mrb[0].mxu0 %v530
    %v876 = vpop.f32.mrb[0].mxu0
    %v877 = vadd.f32 0.0, %v876
    %v878 = vpop.f32.mrb[0].mxu0
    %879 = vmatprep.mubr.f32.mxu0 0.0
    %880 = vmatmul.mubr.f32.gmra.mrb[0].mxu0 %v531
    %v881 = vpop.f32.mrb[0].mxu0
    %v882 = vadd.f32 0.0, %v881
    %v883 = vpop.f32.mrb[0].mxu0
    %884 = vmatprep.mubr.f32.mxu0 0.0
    %885 = vmatmul.mubr.f32.gmra.mrb[0].mxu0 %v532
    %v886 = vpop.f32.mrb[0].mxu0
    %v887 = vadd.f32 0.0, %v886
    %v888 = vpop.f32.mrb[0].mxu0
    %889 = vmatprep.mubr.f32.mxu0 0.0
    %890 = vmatmul.mubr.f32.gmra.mrb[0].mxu0 %v533
    %v891 = vpop.f32.mrb[0].mxu0
    %v892 = vadd.f32 0.0, %v891
    %v893 = vpop.f32.mrb[0].mxu0
    %894 = vmatprep.mubr.f32.mxu0 0.0
    %895 = vmatmul.mubr.f32.gmra.mrb[0].mxu0 %v534
    %v896 = vpop.f32.mrb[0].mxu0
    %v897 = vadd.f32 0.0, %v896
    %v898 = vpop.f32.mrb[0].mxu0
    %899 = vmatprep.mubr.f32.mxu0 0.0
    %900 = vmatmul.mubr.f32.gmra.mrb[0].mxu0 %v535
    %v901 = vpop.f32.mrb[0].mxu0
    %v902 = vadd.f32 0.0, %v901
    %v903 = vpop.f32.mrb[0].mxu0
    %904 = vmatprep.mubr.f32.mxu0 0.0
    %905 = vmatmul.mubr.f32.gmra.mrb[0].mxu0 %v536
    %v906 = vpop.f32.mrb[0].mxu0
    %v907 = vadd.f32 0.0, %v906
    %v908 = vpop.f32.mrb[0].mxu0
    %909 = vmatprep.mubr.f32.mxu0 0.0
    %910 = vmatmul.mubr.f32.gmra.mrb[0].mxu0 %v537
    %v911 = vpop.f32.mrb[0].mxu0
    %v912 = vadd.f32 0.0, %v911
    %v913 = vpop.f32.mrb[0].mxu0
    %914 = vmatprep.mubr.f32.mxu0 0.0
    %915 = vmatmul.mubr.f32.gmra.mrb[0].mxu0 %v538
    %v916 = vpop.f32.mrb[0].mxu0
    %v917 = vadd.f32 0.0, %v916
    %v918 = vpop.f32.mrb[0].mxu0
    %919 = vmatprep.mubr.f32.mxu0 0.0
    %920 = vmatmul.mubr.f32.gmra.mrb[0].mxu0 %v539
    %v921 = vpop.f32.mrb[0].mxu0
    %v922 = vadd.f32 0.0, %v921
    %v923 = vpop.f32.mrb[0].mxu0
    %924 = vmatprep.mubr.f32.mxu0 0.0
    %925 = vmatmul.mubr.f32.gmra.mrb[0].mxu0 %v540
    %v926 = vpop.f32.mrb[0].mxu0
    %v927 = vadd.f32 0.0, %v926
    %v928 = vpop.f32.mrb[0].mxu0
    %929 = vdwg.mxu0
    %s930 = scalar_lea.vmem %s4, 1
    %v931 = vld [vmem:[%s930] sm:$0x1]
    %v933 = vlaneseq
    %v934 = vshrl.u32 %v933, 7
    %v935 = vsub.s32 0, %v934
    %v936 = vrot.slane %v931, %v935
    %938 = vmatprep.subr.mxu0 0.0
    %939 = vmatpush1.msra.mxu0 %v852
    %940 = vmatprep.subr.mxu0 0.0
    %941 = vmatpush1.msra.mxu0 %v857
    %942 = vmatprep.subr.mxu0 0.0
    %943 = vmatpush1.msra.mxu0 %v862
    %944 = vmatprep.subr.mxu0 0.0
    %945 = vmatpush1.msra.mxu0 %v867
    %946 = vmatprep.subr.mxu0 0.0
    %947 = vmatpush1.msra.mxu0 %v872
    %948 = vmatprep.subr.mxu0 0.0
    %949 = vmatpush1.msra.mxu0 %v877
    %950 = vmatprep.subr.mxu0 0.0
    %951 = vmatpush1.msra.mxu0 %v882
    %952 = vmatprep.subr.mxu0 0.0
    %953 = vmatpush1.msra.mxu0 %v887
    %954 = vmatprep.subr.mxu0 0.0
    %955 = vmatpush1.msra.mxu0 %v892
    %956 = vmatprep.subr.mxu0 0.0
    %957 = vmatpush1.msra.mxu0 %v897
    %958 = vmatprep.subr.mxu0 0.0
    %959 = vmatpush1.msra.mxu0 %v902
    %960 = vmatprep.subr.mxu0 0.0
    %961 = vmatpush1.msra.mxu0 %v907
    %962 = vmatprep.subr.mxu0 0.0
    %963 = vmatpush1.msra.mxu0 %v912
    %964 = vmatprep.subr.mxu0 0.0
    %965 = vmatpush1.msra.mxu0 %v917
    %966 = vmatprep.subr.mxu0 0.0
    %967 = vmatpush1.msra.mxu0 %v922
    %968 = vmatprep.subr.mxu0 0.0
    %969 = vmatpush1.msra.mxu0 %v927
    %970 = vmatprep.subr.mxu0 0.0
    %971 = vmatpush1.msra.mxu0 0.0
    %972 = vmatprep.subr.mxu0 0.0
    %973 = vmatpush1.msra.mxu0 0.0
    %974 = vmatprep.subr.mxu0 0.0
    %975 = vmatpush1.msra.mxu0 0.0
    %976 = vmatprep.subr.mxu0 0.0
    %977 = vmatpush1.msra.mxu0 0.0
    %978 = vmatprep.subr.mxu0 0.0
    %979 = vmatpush1.msra.mxu0 0.0
    %980 = vmatprep.subr.mxu0 0.0
    %981 = vmatpush1.msra.mxu0 0.0
    %982 = vmatprep.subr.mxu0 0.0
    %983 = vmatpush1.msra.mxu0 0.0
    %984 = vmatprep.subr.mxu0 0.0
    %985 = vmatpush1.msra.mxu0 0.0
    %986 = vmatprep.subr.mxu0 0.0
    %987 = vmatpush1.msra.mxu0 0.0
    %988 = vmatprep.subr.mxu0 0.0
    %989 = vmatpush1.msra.mxu0 0.0
    %990 = vmatprep.subr.mxu0 0.0
    %991 = vmatpush1.msra.mxu0 0.0
    %992 = vmatprep.subr.mxu0 0.0
    %993 = vmatpush1.msra.mxu0 0.0
    %994 = vmatprep.subr.mxu0 0.0
    %995 = vmatpush1.msra.mxu0 0.0
    %996 = vmatprep.subr.mxu0 0.0
    %997 = vmatpush1.msra.mxu0 0.0
    %998 = vmatprep.subr.mxu0 0.0
    %999 = vmatpush1.msra.mxu0 0.0
    %1000 = vmatprep.subr.mxu0 0.0
    %1001 = vmatpush1.msra.mxu0 0.0
    %1002 = vmatprep.mubr.f32.mxu0 0.0
    %1003 = vmatmul.mubr.f32.gmra.mrb[0].mxu0 %v93
    %v1004 = vpop.f32.mrb[0].mxu0
    %v1005 = vadd.f32 %v936, %v1004
    %v1006 = vpop.f32.mrb[0].mxu0
    %1007 = vmatprep.mubr.f32.mxu0 0.0
    %1008 = vmatmul.mubr.f32.gmra.mrb[0].mxu0 %v94
    %v1009 = vpop.f32.mrb[0].mxu0
    %v1010 = vadd.f32 %v936, %v1009
    %v1011 = vpop.f32.mrb[0].mxu0
    %1012 = vmatprep.mubr.f32.mxu0 0.0
    %1013 = vmatmul.mubr.f32.gmra.mrb[0].mxu0 %v95
    %v1014 = vpop.f32.mrb[0].mxu0
    %v1015 = vadd.f32 %v936, %v1014
    %v1016 = vpop.f32.mrb[0].mxu0
    %1017 = vmatprep.mubr.f32.mxu0 0.0
    %1018 = vmatmul.mubr.f32.gmra.mrb[0].mxu0 %v96
    %v1019 = vpop.f32.mrb[0].mxu0
    %v1020 = vadd.f32 %v936, %v1019
    %v1021 = vpop.f32.mrb[0].mxu0
    %1022 = vmatprep.mubr.f32.mxu0 0.0
    %1023 = vmatmul.mubr.f32.gmra.mrb[0].mxu0 %v97
    %v1024 = vpop.f32.mrb[0].mxu0
    %v1025 = vadd.f32 %v936, %v1024
    %v1026 = vpop.f32.mrb[0].mxu0
    %1027 = vmatprep.mubr.f32.mxu0 0.0
    %1028 = vmatmul.mubr.f32.gmra.mrb[0].mxu0 %v98
    %v1029 = vpop.f32.mrb[0].mxu0
    %v1030 = vadd.f32 %v936, %v1029
    %v1031 = vpop.f32.mrb[0].mxu0
    %1032 = vmatprep.mubr.f32.mxu0 0.0
    %1033 = vmatmul.mubr.f32.gmra.mrb[0].mxu0 %v99
    %v1034 = vpop.f32.mrb[0].mxu0
    %v1035 = vadd.f32 %v936, %v1034
    %v1036 = vpop.f32.mrb[0].mxu0
    %1037 = vmatprep.mubr.f32.mxu0 0.0
    %1038 = vmatmul.mubr.f32.gmra.mrb[0].mxu0 %v100
    %v1039 = vpop.f32.mrb[0].mxu0
    %v1040 = vadd.f32 %v936, %v1039
    %v1041 = vpop.f32.mrb[0].mxu0
    %1042 = vmatprep.mubr.f32.mxu0 0.0
    %1043 = vmatmul.mubr.f32.gmra.mrb[0].mxu0 %v101
    %v1044 = vpop.f32.mrb[0].mxu0
    %v1045 = vadd.f32 %v936, %v1044
    %v1046 = vpop.f32.mrb[0].mxu0
    %1047 = vmatprep.mubr.f32.mxu0 0.0
    %1048 = vmatmul.mubr.f32.gmra.mrb[0].mxu0 %v102
    %v1049 = vpop.f32.mrb[0].mxu0
    %v1050 = vadd.f32 %v936, %v1049
    %v1051 = vpop.f32.mrb[0].mxu0
    %1052 = vmatprep.mubr.f32.mxu0 0.0
    %1053 = vmatmul.mubr.f32.gmra.mrb[0].mxu0 %v103
    %v1054 = vpop.f32.mrb[0].mxu0
    %v1055 = vadd.f32 %v936, %v1054
    %v1056 = vpop.f32.mrb[0].mxu0
    %1057 = vmatprep.mubr.f32.mxu0 0.0
    %1058 = vmatmul.mubr.f32.gmra.mrb[0].mxu0 %v104
    %v1059 = vpop.f32.mrb[0].mxu0
    %v1060 = vadd.f32 %v936, %v1059
    %v1061 = vpop.f32.mrb[0].mxu0
    %1062 = vmatprep.mubr.f32.mxu0 0.0
    %1063 = vmatmul.mubr.f32.gmra.mrb[0].mxu0 %v105
    %v1064 = vpop.f32.mrb[0].mxu0
    %v1065 = vadd.f32 %v936, %v1064
    %v1066 = vpop.f32.mrb[0].mxu0
    %1067 = vmatprep.mubr.f32.mxu0 0.0
    %1068 = vmatmul.mubr.f32.gmra.mrb[0].mxu0 %v106
    %v1069 = vpop.f32.mrb[0].mxu0
    %v1070 = vadd.f32 %v936, %v1069
    %v1071 = vpop.f32.mrb[0].mxu0
    %1072 = vmatprep.mubr.f32.mxu0 0.0
    %1073 = vmatmul.mubr.f32.gmra.mrb[0].mxu0 %v107
    %v1074 = vpop.f32.mrb[0].mxu0
    %v1075 = vadd.f32 %v936, %v1074
    %v1076 = vpop.f32.mrb[0].mxu0
    %1077 = vmatprep.mubr.f32.mxu0 0.0
    %1078 = vmatmul.mubr.f32.gmra.mrb[0].mxu0 %v108
    %v1079 = vpop.f32.mrb[0].mxu0
    %v1080 = vadd.f32 %v936, %v1079
    %v1081 = vpop.f32.mrb[0].mxu0
    %1082 = vdwg.mxu0
    %v1083 = vmax.f32 %v1005, 0.0
    %v1084 = vmax.f32 %v1010, 0.0
    %v1085 = vmax.f32 %v1015, 0.0
    %v1086 = vmax.f32 %v1020, 0.0
    %v1087 = vmax.f32 %v1025, 0.0
    %v1088 = vmax.f32 %v1030, 0.0
    %v1089 = vmax.f32 %v1035, 0.0
    %v1090 = vmax.f32 %v1040, 0.0
    %v1091 = vmax.f32 %v1045, 0.0
    %v1092 = vmax.f32 %v1050, 0.0
    %v1093 = vmax.f32 %v1055, 0.0
    %v1094 = vmax.f32 %v1060, 0.0
    %v1095 = vmax.f32 %v1065, 0.0
    %v1096 = vmax.f32 %v1070, 0.0
    %v1097 = vmax.f32 %v1075, 0.0
    %v1098 = vmax.f32 %v1080, 0.0
    %1099 = vmatprep.subr.mxu0 0.0
    %1100 = vmatpush1.msra.mxu0 %v1083
    %1101 = vmatprep.subr.mxu0 0.0
    %1102 = vmatpush1.msra.mxu0 %v1084
    %1103 = vmatprep.subr.mxu0 0.0
    %1104 = vmatpush1.msra.mxu0 %v1085
    %1105 = vmatprep.subr.mxu0 0.0
    %1106 = vmatpush1.msra.mxu0 %v1086
    %1107 = vmatprep.subr.mxu0 0.0
    %1108 = vmatpush1.msra.mxu0 %v1087
    %1109 = vmatprep.subr.mxu0 0.0
    %1110 = vmatpush1.msra.mxu0 %v1088
    %1111 = vmatprep.subr.mxu0 0.0
    %1112 = vmatpush1.msra.mxu0 %v1089
    %1113 = vmatprep.subr.mxu0 0.0
    %1114 = vmatpush1.msra.mxu0 %v1090
    %1115 = vmatprep.subr.mxu0 0.0
    %1116 = vmatpush1.msra.mxu0 %v1091
    %1117 = vmatprep.subr.mxu0 0.0
    %1118 = vmatpush1.msra.mxu0 %v1092
    %1119 = vmatprep.subr.mxu0 0.0
    %1120 = vmatpush1.msra.mxu0 %v1093
    %1121 = vmatprep.subr.mxu0 0.0
    %1122 = vmatpush1.msra.mxu0 %v1094
    %1123 = vmatprep.subr.mxu0 0.0
    %1124 = vmatpush1.msra.mxu0 %v1095
    %1125 = vmatprep.subr.mxu0 0.0
    %1126 = vmatpush1.msra.mxu0 %v1096
    %1127 = vmatprep.subr.mxu0 0.0
    %1128 = vmatpush1.msra.mxu0 %v1097
    %1129 = vmatprep.subr.mxu0 0.0
    %1130 = vmatpush1.msra.mxu0 %v1098
    %1131 = vmatprep.subr.mxu0 0.0
    %1132 = vmatpush1.msra.mxu0 0.0
    %1133 = vmatprep.subr.mxu0 0.0
    %1134 = vmatpush1.msra.mxu0 0.0
    %1135 = vmatprep.subr.mxu0 0.0
    %1136 = vmatpush1.msra.mxu0 0.0
    %1137 = vmatprep.subr.mxu0 0.0
    %1138 = vmatpush1.msra.mxu0 0.0
    %1139 = vmatprep.subr.mxu0 0.0
    %1140 = vmatpush1.msra.mxu0 0.0
    %1141 = vmatprep.subr.mxu0 0.0
    %1142 = vmatpush1.msra.mxu0 0.0
    %1143 = vmatprep.subr.mxu0 0.0
    %1144 = vmatpush1.msra.mxu0 0.0
    %1145 = vmatprep.subr.mxu0 0.0
    %1146 = vmatpush1.msra.mxu0 0.0
    %1147 = vmatprep.subr.mxu0 0.0
    %1148 = vmatpush1.msra.mxu0 0.0
    %1149 = vmatprep.subr.mxu0 0.0
    %1150 = vmatpush1.msra.mxu0 0.0
    %1151 = vmatprep.subr.mxu0 0.0
    %1152 = vmatpush1.msra.mxu0 0.0
    %1153 = vmatprep.subr.mxu0 0.0
    %1154 = vmatpush1.msra.mxu0 0.0
    %1155 = vmatprep.subr.mxu0 0.0
    %1156 = vmatpush1.msra.mxu0 0.0
    %1157 = vmatprep.subr.mxu0 0.0
    %1158 = vmatpush1.msra.mxu0 0.0
    %1159 = vmatprep.subr.mxu0 0.0
    %1160 = vmatpush1.msra.mxu0 0.0
    %1161 = vmatprep.subr.mxu0 0.0
    %1162 = vmatpush1.msra.mxu0 0.0
    %1163 = vmatprep.mubr.f32.mxu0 0.0
    %1164 = vmatmul.mubr.f32.gmra.mrb[0].mxu0 %v109
    %v1165 = vpop.f32.mrb[0].mxu0
    %v1166 = vadd.f32 0.0, %v1165
    %v1167 = vpop.f32.mrb[0].mxu0
    %1168 = vdwg.mxu0
    %s1169 = scalar_lea.vmem [#allocation10], 256
    %v1170 = vld [vmem:[%s1169] sm:$0xff]
    %v1171 = vld [vmem:[%s1169 + $0x8] sm:$0xff]
    %v1172 = vld [vmem:[%s1169 + $0x10] sm:$0xff]
    %v1173 = vld [vmem:[%s1169 + $0x18] sm:$0xff]
    %v1174 = vld [vmem:[%s1169 + $0x20] sm:$0xff]
    %v1175 = vld [vmem:[%s1169 + $0x28] sm:$0xff]
    %v1176 = vld [vmem:[%s1169 + $0x30] sm:$0xff]
    %v1177 = vld [vmem:[%s1169 + $0x38] sm:$0xff]
    %v1178 = vld [vmem:[%s1169 + $0x40] sm:$0xff]
    %v1179 = vld [vmem:[%s1169 + $0x48] sm:$0xff]
    %v1180 = vld [vmem:[%s1169 + $0x50] sm:$0xff]
    %v1181 = vld [vmem:[%s1169 + $0x58] sm:$0xff]
    %v1182 = vld [vmem:[%s1169 + $0x60] sm:$0xff]
    %v1183 = vld [vmem:[%s1169 + $0x68] sm:$0xff]
    %v1184 = vld [vmem:[%s1169 + $0x70] sm:$0xff]
    %v1185 = vld [vmem:[%s1169 + $0x78] sm:$0xff]
    %1186 = vmatprep.subr.mxu0 0.0
    %1187 = vmatpush1.msra.mxu0 %v1170
    %1188 = vmatprep.subr.mxu0 0.0
    %1189 = vmatpush1.msra.mxu0 %v1171
    %1190 = vmatprep.subr.mxu0 0.0
    %1191 = vmatpush1.msra.mxu0 %v1172
    %1192 = vmatprep.subr.mxu0 0.0
    %1193 = vmatpush1.msra.mxu0 %v1173
    %1194 = vmatprep.subr.mxu0 0.0
    %1195 = vmatpush1.msra.mxu0 %v1174
    %1196 = vmatprep.subr.mxu0 0.0
    %1197 = vmatpush1.msra.mxu0 %v1175
    %1198 = vmatprep.subr.mxu0 0.0
    %1199 = vmatpush1.msra.mxu0 %v1176
    %1200 = vmatprep.subr.mxu0 0.0
    %1201 = vmatpush1.msra.mxu0 %v1177
    %1202 = vmatprep.subr.mxu0 0.0
    %1203 = vmatpush1.msra.mxu0 %v1178
    %1204 = vmatprep.subr.mxu0 0.0
    %1205 = vmatpush1.msra.mxu0 %v1179
    %1206 = vmatprep.subr.mxu0 0.0
    %1207 = vmatpush1.msra.mxu0 %v1180
    %1208 = vmatprep.subr.mxu0 0.0
    %1209 = vmatpush1.msra.mxu0 %v1181
    %1210 = vmatprep.subr.mxu0 0.0
    %1211 = vmatpush1.msra.mxu0 %v1182
    %1212 = vmatprep.subr.mxu0 0.0
    %1213 = vmatpush1.msra.mxu0 %v1183
    %1214 = vmatprep.subr.mxu0 0.0
    %1215 = vmatpush1.msra.mxu0 %v1184
    %1216 = vmatprep.subr.mxu0 0.0
    %1217 = vmatpush1.msra.mxu0 %v1185
    %1218 = vmatprep.subr.mxu0 0.0
    %1219 = vmatpush1.msra.mxu0 0.0
    %1220 = vmatprep.subr.mxu0 0.0
    %1221 = vmatpush1.msra.mxu0 0.0
    %1222 = vmatprep.subr.mxu0 0.0
    %1223 = vmatpush1.msra.mxu0 0.0
    %1224 = vmatprep.subr.mxu0 0.0
    %1225 = vmatpush1.msra.mxu0 0.0
    %1226 = vmatprep.subr.mxu0 0.0
    %1227 = vmatpush1.msra.mxu0 0.0
    %1228 = vmatprep.subr.mxu0 0.0
    %1229 = vmatpush1.msra.mxu0 0.0
    %1230 = vmatprep.subr.mxu0 0.0
    %1231 = vmatpush1.msra.mxu0 0.0
    %1232 = vmatprep.subr.mxu0 0.0
    %1233 = vmatpush1.msra.mxu0 0.0
    %1234 = vmatprep.subr.mxu0 0.0
    %1235 = vmatpush1.msra.mxu0 0.0
    %1236 = vmatprep.subr.mxu0 0.0
    %1237 = vmatpush1.msra.mxu0 0.0
    %1238 = vmatprep.subr.mxu0 0.0
    %1239 = vmatpush1.msra.mxu0 0.0
    %1240 = vmatprep.subr.mxu0 0.0
    %1241 = vmatpush1.msra.mxu0 0.0
    %1242 = vmatprep.subr.mxu0 0.0
    %1243 = vmatpush1.msra.mxu0 0.0
    %1244 = vmatprep.subr.mxu0 0.0
    %1245 = vmatpush1.msra.mxu0 0.0
    %1246 = vmatprep.subr.mxu0 0.0
    %1247 = vmatpush1.msra.mxu0 0.0
    %1248 = vmatprep.subr.mxu0 0.0
    %1249 = vmatpush1.msra.mxu0 0.0
    %1250 = vmatprep.mubr.f32.mxu0 0.0
    %1251 = vmatmul.mubr.f32.gmra.mrb[0].mxu0 %v1166
    %v1252 = vpop.f32.mrb[0].mxu0
    %v1253 = vadd.f32 0.0, %v1252
    %v1254 = vpop.f32.mrb[0].mxu0
    %1255 = vdwg.mxu0
    %v1256 = vadd.f32 %v765, %v1253
    %s1257 = scalar_lea.vmem [#allocation8], 256
    %v1258 = vld [vmem:[%s1257] sm:$0xff]
    %v1259 = vld [vmem:[%s1257 + $0x8] sm:$0xff]
    %v1260 = vld [vmem:[%s1257 + $0x10] sm:$0xff]
    %v1261 = vld [vmem:[%s1257 + $0x18] sm:$0xff]
    %v1262 = vld [vmem:[%s1257 + $0x20] sm:$0xff]
    %v1263 = vld [vmem:[%s1257 + $0x28] sm:$0xff]
    %v1264 = vld [vmem:[%s1257 + $0x30] sm:$0xff]
    %v1265 = vld [vmem:[%s1257 + $0x38] sm:$0xff]
    %v1266 = vld [vmem:[%s1257 + $0x40] sm:$0xff]
    %v1267 = vld [vmem:[%s1257 + $0x48] sm:$0xff]
    %v1268 = vld [vmem:[%s1257 + $0x50] sm:$0xff]
    %v1269 = vld [vmem:[%s1257 + $0x58] sm:$0xff]
    %v1270 = vld [vmem:[%s1257 + $0x60] sm:$0xff]
    %v1271 = vld [vmem:[%s1257 + $0x68] sm:$0xff]
    %v1272 = vld [vmem:[%s1257 + $0x70] sm:$0xff]
    %v1273 = vld [vmem:[%s1257 + $0x78] sm:$0xff]
    %1274 = vmatprep.subr.mxu0 0.0
    %1275 = vmatpush1.msra.mxu0 %v1258
    %1276 = vmatprep.subr.mxu0 0.0
    %1277 = vmatpush1.msra.mxu0 %v1259
    %1278 = vmatprep.subr.mxu0 0.0
    %1279 = vmatpush1.msra.mxu0 %v1260
    %1280 = vmatprep.subr.mxu0 0.0
    %1281 = vmatpush1.msra.mxu0 %v1261
    %1282 = vmatprep.subr.mxu0 0.0
    %1283 = vmatpush1.msra.mxu0 %v1262
    %1284 = vmatprep.subr.mxu0 0.0
    %1285 = vmatpush1.msra.mxu0 %v1263
    %1286 = vmatprep.subr.mxu0 0.0
    %1287 = vmatpush1.msra.mxu0 %v1264
    %1288 = vmatprep.subr.mxu0 0.0
    %1289 = vmatpush1.msra.mxu0 %v1265
    %1290 = vmatprep.subr.mxu0 0.0
    %1291 = vmatpush1.msra.mxu0 %v1266
    %1292 = vmatprep.subr.mxu0 0.0
    %1293 = vmatpush1.msra.mxu0 %v1267
    %1294 = vmatprep.subr.mxu0 0.0
    %1295 = vmatpush1.msra.mxu0 %v1268
    %1296 = vmatprep.subr.mxu0 0.0
    %1297 = vmatpush1.msra.mxu0 %v1269
    %1298 = vmatprep.subr.mxu0 0.0
    %1299 = vmatpush1.msra.mxu0 %v1270
    %1300 = vmatprep.subr.mxu0 0.0
    %1301 = vmatpush1.msra.mxu0 %v1271
    %1302 = vmatprep.subr.mxu0 0.0
    %1303 = vmatpush1.msra.mxu0 %v1272
    %1304 = vmatprep.subr.mxu0 0.0
    %1305 = vmatpush1.msra.mxu0 %v1273
    %1306 = vmatprep.subr.mxu0 0.0
    %1307 = vmatpush1.msra.mxu0 0.0
    %1308 = vmatprep.subr.mxu0 0.0
    %1309 = vmatpush1.msra.mxu0 0.0
    %1310 = vmatprep.subr.mxu0 0.0
    %1311 = vmatpush1.msra.mxu0 0.0
    %1312 = vmatprep.subr.mxu0 0.0
    %1313 = vmatpush1.msra.mxu0 0.0
    %1314 = vmatprep.subr.mxu0 0.0
    %1315 = vmatpush1.msra.mxu0 0.0
    %1316 = vmatprep.subr.mxu0 0.0
    %1317 = vmatpush1.msra.mxu0 0.0
    %1318 = vmatprep.subr.mxu0 0.0
    %1319 = vmatpush1.msra.mxu0 0.0
    %1320 = vmatprep.subr.mxu0 0.0
    %1321 = vmatpush1.msra.mxu0 0.0
    %1322 = vmatprep.subr.mxu0 0.0
    %1323 = vmatpush1.msra.mxu0 0.0
    %1324 = vmatprep.subr.mxu0 0.0
    %1325 = vmatpush1.msra.mxu0 0.0
    %1326 = vmatprep.subr.mxu0 0.0
    %1327 = vmatpush1.msra.mxu0 0.0
    %1328 = vmatprep.subr.mxu0 0.0
    %1329 = vmatpush1.msra.mxu0 0.0
    %1330 = vmatprep.subr.mxu0 0.0
    %1331 = vmatpush1.msra.mxu0 0.0
    %1332 = vmatprep.subr.mxu0 0.0
    %1333 = vmatpush1.msra.mxu0 0.0
    %1334 = vmatprep.subr.mxu0 0.0
    %1335 = vmatpush1.msra.mxu0 0.0
    %1336 = vmatprep.subr.mxu0 0.0
    %1337 = vmatpush1.msra.mxu0 0.0
    %1338 = vmatprep.mubr.f32.mxu0 0.0
    %1339 = vmatmul.mubr.f32.gmra.mrb[0].mxu0 %v1083
    %v1340 = vpop.f32.mrb[0].mxu0
    %v1341 = vadd.f32 0.0, %v1340
    %v1342 = vpop.f32.mrb[0].mxu0
    %1343 = vmatprep.mubr.f32.mxu0 0.0
    %1344 = vmatmul.mubr.f32.gmra.mrb[0].mxu0 %v1084
    %v1345 = vpop.f32.mrb[0].mxu0
    %v1346 = vadd.f32 0.0, %v1345
    %v1347 = vpop.f32.mrb[0].mxu0
    %1348 = vmatprep.mubr.f32.mxu0 0.0
    %1349 = vmatmul.mubr.f32.gmra.mrb[0].mxu0 %v1085
    %v1350 = vpop.f32.mrb[0].mxu0
    %v1351 = vadd.f32 0.0, %v1350
    %v1352 = vpop.f32.mrb[0].mxu0
    %1353 = vmatprep.mubr.f32.mxu0 0.0
    %1354 = vmatmul.mubr.f32.gmra.mrb[0].mxu0 %v1086
    %v1355 = vpop.f32.mrb[0].mxu0
    %v1356 = vadd.f32 0.0, %v1355
    %v1357 = vpop.f32.mrb[0].mxu0
    %1358 = vmatprep.mubr.f32.mxu0 0.0
    %1359 = vmatmul.mubr.f32.gmra.mrb[0].mxu0 %v1087
    %v1360 = vpop.f32.mrb[0].mxu0
    %v1361 = vadd.f32 0.0, %v1360
    %v1362 = vpop.f32.mrb[0].mxu0
    %1363 = vmatprep.mubr.f32.mxu0 0.0
    %1364 = vmatmul.mubr.f32.gmra.mrb[0].mxu0 %v1088
    %v1365 = vpop.f32.mrb[0].mxu0
    %v1366 = vadd.f32 0.0, %v1365
    %v1367 = vpop.f32.mrb[0].mxu0
    %1368 = vmatprep.mubr.f32.mxu0 0.0
    %1369 = vmatmul.mubr.f32.gmra.mrb[0].mxu0 %v1089
    %v1370 = vpop.f32.mrb[0].mxu0
    %v1371 = vadd.f32 0.0, %v1370
    %v1372 = vpop.f32.mrb[0].mxu0
    %1373 = vmatprep.mubr.f32.mxu0 0.0
    %1374 = vmatmul.mubr.f32.gmra.mrb[0].mxu0 %v1090
    %v1375 = vpop.f32.mrb[0].mxu0
    %v1376 = vadd.f32 0.0, %v1375
    %v1377 = vpop.f32.mrb[0].mxu0
    %1378 = vmatprep.mubr.f32.mxu0 0.0
    %1379 = vmatmul.mubr.f32.gmra.mrb[0].mxu0 %v1091
    %v1380 = vpop.f32.mrb[0].mxu0
    %v1381 = vadd.f32 0.0, %v1380
    %v1382 = vpop.f32.mrb[0].mxu0
    %1383 = vmatprep.mubr.f32.mxu0 0.0
    %1384 = vmatmul.mubr.f32.gmra.mrb[0].mxu0 %v1092
    %v1385 = vpop.f32.mrb[0].mxu0
    %v1386 = vadd.f32 0.0, %v1385
    %v1387 = vpop.f32.mrb[0].mxu0
    %1388 = vmatprep.mubr.f32.mxu0 0.0
    %1389 = vmatmul.mubr.f32.gmra.mrb[0].mxu0 %v1093
    %v1390 = vpop.f32.mrb[0].mxu0
    %v1391 = vadd.f32 0.0, %v1390
    %v1392 = vpop.f32.mrb[0].mxu0
    %1393 = vmatprep.mubr.f32.mxu0 0.0
    %1394 = vmatmul.mubr.f32.gmra.mrb[0].mxu0 %v1094
    %v1395 = vpop.f32.mrb[0].mxu0
    %v1396 = vadd.f32 0.0, %v1395
    %v1397 = vpop.f32.mrb[0].mxu0
    %1398 = vmatprep.mubr.f32.mxu0 0.0
    %1399 = vmatmul.mubr.f32.gmra.mrb[0].mxu0 %v1095
    %v1400 = vpop.f32.mrb[0].mxu0
    %v1401 = vadd.f32 0.0, %v1400
    %v1402 = vpop.f32.mrb[0].mxu0
    %1403 = vmatprep.mubr.f32.mxu0 0.0
    %1404 = vmatmul.mubr.f32.gmra.mrb[0].mxu0 %v1096
    %v1405 = vpop.f32.mrb[0].mxu0
    %v1406 = vadd.f32 0.0, %v1405
    %v1407 = vpop.f32.mrb[0].mxu0
    %1408 = vmatprep.mubr.f32.mxu0 0.0
    %1409 = vmatmul.mubr.f32.gmra.mrb[0].mxu0 %v1097
    %v1410 = vpop.f32.mrb[0].mxu0
    %v1411 = vadd.f32 0.0, %v1410
    %v1412 = vpop.f32.mrb[0].mxu0
    %1413 = vmatprep.mubr.f32.mxu0 0.0
    %1414 = vmatmul.mubr.f32.gmra.mrb[0].mxu0 %v1098
    %v1415 = vpop.f32.mrb[0].mxu0
    %v1416 = vadd.f32 0.0, %v1415
    %v1417 = vpop.f32.mrb[0].mxu0
    %1418 = vdwg.mxu0
    %s1419 = scalar_lea.vmem %s4, 2
    %v1420 = vld [vmem:[%s1419] sm:$0x1]
    %v1422 = vlaneseq
    %v1423 = vshrl.u32 %v1422, 7
    %v1424 = vsub.s32 0, %v1423
    %v1425 = vrot.slane %v1420, %v1424
    %1427 = vmatprep.subr.mxu0 0.0
    %1428 = vmatpush1.msra.mxu0 %v1341
    %1429 = vmatprep.subr.mxu0 0.0
    %1430 = vmatpush1.msra.mxu0 %v1346
    %1431 = vmatprep.subr.mxu0 0.0
    %1432 = vmatpush1.msra.mxu0 %v1351
    %1433 = vmatprep.subr.mxu0 0.0
    %1434 = vmatpush1.msra.mxu0 %v1356
    %1435 = vmatprep.subr.mxu0 0.0
    %1436 = vmatpush1.msra.mxu0 %v1361
    %1437 = vmatprep.subr.mxu0 0.0
    %1438 = vmatpush1.msra.mxu0 %v1366
    %1439 = vmatprep.subr.mxu0 0.0
    %1440 = vmatpush1.msra.mxu0 %v1371
    %1441 = vmatprep.subr.mxu0 0.0
    %1442 = vmatpush1.msra.mxu0 %v1376
    %1443 = vmatprep.subr.mxu0 0.0
    %1444 = vmatpush1.msra.mxu0 %v1381
    %1445 = vmatprep.subr.mxu0 0.0
    %1446 = vmatpush1.msra.mxu0 %v1386
    %1447 = vmatprep.subr.mxu0 0.0
    %1448 = vmatpush1.msra.mxu0 %v1391
    %1449 = vmatprep.subr.mxu0 0.0
    %1450 = vmatpush1.msra.mxu0 %v1396
    %1451 = vmatprep.subr.mxu0 0.0
    %1452 = vmatpush1.msra.mxu0 %v1401
    %1453 = vmatprep.subr.mxu0 0.0
    %1454 = vmatpush1.msra.mxu0 %v1406
    %1455 = vmatprep.subr.mxu0 0.0
    %1456 = vmatpush1.msra.mxu0 %v1411
    %1457 = vmatprep.subr.mxu0 0.0
    %1458 = vmatpush1.msra.mxu0 %v1416
    %1459 = vmatprep.subr.mxu0 0.0
    %1460 = vmatpush1.msra.mxu0 0.0
    %1461 = vmatprep.subr.mxu0 0.0
    %1462 = vmatpush1.msra.mxu0 0.0
    %1463 = vmatprep.subr.mxu0 0.0
    %1464 = vmatpush1.msra.mxu0 0.0
    %1465 = vmatprep.subr.mxu0 0.0
    %1466 = vmatpush1.msra.mxu0 0.0
    %1467 = vmatprep.subr.mxu0 0.0
    %1468 = vmatpush1.msra.mxu0 0.0
    %1469 = vmatprep.subr.mxu0 0.0
    %1470 = vmatpush1.msra.mxu0 0.0
    %1471 = vmatprep.subr.mxu0 0.0
    %1472 = vmatpush1.msra.mxu0 0.0
    %1473 = vmatprep.subr.mxu0 0.0
    %1474 = vmatpush1.msra.mxu0 0.0
    %1475 = vmatprep.subr.mxu0 0.0
    %1476 = vmatpush1.msra.mxu0 0.0
    %1477 = vmatprep.subr.mxu0 0.0
    %1478 = vmatpush1.msra.mxu0 0.0
    %1479 = vmatprep.subr.mxu0 0.0
    %1480 = vmatpush1.msra.mxu0 0.0
    %1481 = vmatprep.subr.mxu0 0.0
    %1482 = vmatpush1.msra.mxu0 0.0
    %1483 = vmatprep.subr.mxu0 0.0
    %1484 = vmatpush1.msra.mxu0 0.0
    %1485 = vmatprep.subr.mxu0 0.0
    %1486 = vmatpush1.msra.mxu0 0.0
    %1487 = vmatprep.subr.mxu0 0.0
    %1488 = vmatpush1.msra.mxu0 0.0
    %1489 = vmatprep.subr.mxu0 0.0
    %1490 = vmatpush1.msra.mxu0 0.0
    %1491 = vmatprep.mubr.f32.mxu0 0.0
    %1492 = vmatmul.mubr.f32.gmra.mrb[0].mxu0 %v93
    %v1493 = vpop.f32.mrb[0].mxu0
    %v1494 = vadd.f32 %v1425, %v1493
    %v1495 = vpop.f32.mrb[0].mxu0
    %1496 = vmatprep.mubr.f32.mxu0 0.0
    %1497 = vmatmul.mubr.f32.gmra.mrb[0].mxu0 %v94
    %v1498 = vpop.f32.mrb[0].mxu0
    %v1499 = vadd.f32 %v1425, %v1498
    %v1500 = vpop.f32.mrb[0].mxu0
    %1501 = vmatprep.mubr.f32.mxu0 0.0
    %1502 = vmatmul.mubr.f32.gmra.mrb[0].mxu0 %v95
    %v1503 = vpop.f32.mrb[0].mxu0
    %v1504 = vadd.f32 %v1425, %v1503
    %v1505 = vpop.f32.mrb[0].mxu0
    %1506 = vmatprep.mubr.f32.mxu0 0.0
    %1507 = vmatmul.mubr.f32.gmra.mrb[0].mxu0 %v96
    %v1508 = vpop.f32.mrb[0].mxu0
    %v1509 = vadd.f32 %v1425, %v1508
    %v1510 = vpop.f32.mrb[0].mxu0
    %1511 = vmatprep.mubr.f32.mxu0 0.0
    %1512 = vmatmul.mubr.f32.gmra.mrb[0].mxu0 %v97
    %v1513 = vpop.f32.mrb[0].mxu0
    %v1514 = vadd.f32 %v1425, %v1513
    %v1515 = vpop.f32.mrb[0].mxu0
    %1516 = vmatprep.mubr.f32.mxu0 0.0
    %1517 = vmatmul.mubr.f32.gmra.mrb[0].mxu0 %v98
    %v1518 = vpop.f32.mrb[0].mxu0
    %v1519 = vadd.f32 %v1425, %v1518
    %v1520 = vpop.f32.mrb[0].mxu0
    %1521 = vmatprep.mubr.f32.mxu0 0.0
    %1522 = vmatmul.mubr.f32.gmra.mrb[0].mxu0 %v99
    %v1523 = vpop.f32.mrb[0].mxu0
    %v1524 = vadd.f32 %v1425, %v1523
    %v1525 = vpop.f32.mrb[0].mxu0
    %1526 = vmatprep.mubr.f32.mxu0 0.0
    %1527 = vmatmul.mubr.f32.gmra.mrb[0].mxu0 %v100
    %v1528 = vpop.f32.mrb[0].mxu0
    %v1529 = vadd.f32 %v1425, %v1528
    %v1530 = vpop.f32.mrb[0].mxu0
    %1531 = vmatprep.mubr.f32.mxu0 0.0
    %1532 = vmatmul.mubr.f32.gmra.mrb[0].mxu0 %v101
    %v1533 = vpop.f32.mrb[0].mxu0
    %v1534 = vadd.f32 %v1425, %v1533
    %v1535 = vpop.f32.mrb[0].mxu0
    %1536 = vmatprep.mubr.f32.mxu0 0.0
    %1537 = vmatmul.mubr.f32.gmra.mrb[0].mxu0 %v102
    %v1538 = vpop.f32.mrb[0].mxu0
    %v1539 = vadd.f32 %v1425, %v1538
    %v1540 = vpop.f32.mrb[0].mxu0
    %1541 = vmatprep.mubr.f32.mxu0 0.0
    %1542 = vmatmul.mubr.f32.gmra.mrb[0].mxu0 %v103
    %v1543 = vpop.f32.mrb[0].mxu0
    %v1544 = vadd.f32 %v1425, %v1543
    %v1545 = vpop.f32.mrb[0].mxu0
    %1546 = vmatprep.mubr.f32.mxu0 0.0
    %1547 = vmatmul.mubr.f32.gmra.mrb[0].mxu0 %v104
    %v1548 = vpop.f32.mrb[0].mxu0
    %v1549 = vadd.f32 %v1425, %v1548
    %v1550 = vpop.f32.mrb[0].mxu0
    %1551 = vmatprep.mubr.f32.mxu0 0.0
    %1552 = vmatmul.mubr.f32.gmra.mrb[0].mxu0 %v105
    %v1553 = vpop.f32.mrb[0].mxu0
    %v1554 = vadd.f32 %v1425, %v1553
    %v1555 = vpop.f32.mrb[0].mxu0
    %1556 = vmatprep.mubr.f32.mxu0 0.0
    %1557 = vmatmul.mubr.f32.gmra.mrb[0].mxu0 %v106
    %v1558 = vpop.f32.mrb[0].mxu0
    %v1559 = vadd.f32 %v1425, %v1558
    %v1560 = vpop.f32.mrb[0].mxu0
    %1561 = vmatprep.mubr.f32.mxu0 0.0
    %1562 = vmatmul.mubr.f32.gmra.mrb[0].mxu0 %v107
    %v1563 = vpop.f32.mrb[0].mxu0
    %v1564 = vadd.f32 %v1425, %v1563
    %v1565 = vpop.f32.mrb[0].mxu0
    %1566 = vmatprep.mubr.f32.mxu0 0.0
    %1567 = vmatmul.mubr.f32.gmra.mrb[0].mxu0 %v108
    %v1568 = vpop.f32.mrb[0].mxu0
    %v1569 = vadd.f32 %v1425, %v1568
    %v1570 = vpop.f32.mrb[0].mxu0
    %1571 = vdwg.mxu0
    %v1572 = vmax.f32 %v1494, 0.0
    %v1573 = vmax.f32 %v1499, 0.0
    %v1574 = vmax.f32 %v1504, 0.0
    %v1575 = vmax.f32 %v1509, 0.0
    %v1576 = vmax.f32 %v1514, 0.0
    %v1577 = vmax.f32 %v1519, 0.0
    %v1578 = vmax.f32 %v1524, 0.0
    %v1579 = vmax.f32 %v1529, 0.0
    %v1580 = vmax.f32 %v1534, 0.0
    %v1581 = vmax.f32 %v1539, 0.0
    %v1582 = vmax.f32 %v1544, 0.0
    %v1583 = vmax.f32 %v1549, 0.0
    %v1584 = vmax.f32 %v1554, 0.0
    %v1585 = vmax.f32 %v1559, 0.0
    %v1586 = vmax.f32 %v1564, 0.0
    %v1587 = vmax.f32 %v1569, 0.0
    %1588 = vmatprep.subr.mxu0 0.0
    %1589 = vmatpush1.msra.mxu0 %v1572
    %1590 = vmatprep.subr.mxu0 0.0
    %1591 = vmatpush1.msra.mxu0 %v1573
    %1592 = vmatprep.subr.mxu0 0.0
    %1593 = vmatpush1.msra.mxu0 %v1574
    %1594 = vmatprep.subr.mxu0 0.0
    %1595 = vmatpush1.msra.mxu0 %v1575
    %1596 = vmatprep.subr.mxu0 0.0
    %1597 = vmatpush1.msra.mxu0 %v1576
    %1598 = vmatprep.subr.mxu0 0.0
    %1599 = vmatpush1.msra.mxu0 %v1577
    %1600 = vmatprep.subr.mxu0 0.0
    %1601 = vmatpush1.msra.mxu0 %v1578
    %1602 = vmatprep.subr.mxu0 0.0
    %1603 = vmatpush1.msra.mxu0 %v1579
    %1604 = vmatprep.subr.mxu0 0.0
    %1605 = vmatpush1.msra.mxu0 %v1580
    %1606 = vmatprep.subr.mxu0 0.0
    %1607 = vmatpush1.msra.mxu0 %v1581
    %1608 = vmatprep.subr.mxu0 0.0
    %1609 = vmatpush1.msra.mxu0 %v1582
    %1610 = vmatprep.subr.mxu0 0.0
    %1611 = vmatpush1.msra.mxu0 %v1583
    %1612 = vmatprep.subr.mxu0 0.0
    %1613 = vmatpush1.msra.mxu0 %v1584
    %1614 = vmatprep.subr.mxu0 0.0
    %1615 = vmatpush1.msra.mxu0 %v1585
    %1616 = vmatprep.subr.mxu0 0.0
    %1617 = vmatpush1.msra.mxu0 %v1586
    %1618 = vmatprep.subr.mxu0 0.0
    %1619 = vmatpush1.msra.mxu0 %v1587
    %1620 = vmatprep.subr.mxu0 0.0
    %1621 = vmatpush1.msra.mxu0 0.0
    %1622 = vmatprep.subr.mxu0 0.0
    %1623 = vmatpush1.msra.mxu0 0.0
    %1624 = vmatprep.subr.mxu0 0.0
    %1625 = vmatpush1.msra.mxu0 0.0
    %1626 = vmatprep.subr.mxu0 0.0
    %1627 = vmatpush1.msra.mxu0 0.0
    %1628 = vmatprep.subr.mxu0 0.0
    %1629 = vmatpush1.msra.mxu0 0.0
    %1630 = vmatprep.subr.mxu0 0.0
    %1631 = vmatpush1.msra.mxu0 0.0
    %1632 = vmatprep.subr.mxu0 0.0
    %1633 = vmatpush1.msra.mxu0 0.0
    %1634 = vmatprep.subr.mxu0 0.0
    %1635 = vmatpush1.msra.mxu0 0.0
    %1636 = vmatprep.subr.mxu0 0.0
    %1637 = vmatpush1.msra.mxu0 0.0
    %1638 = vmatprep.subr.mxu0 0.0
    %1639 = vmatpush1.msra.mxu0 0.0
    %1640 = vmatprep.subr.mxu0 0.0
    %1641 = vmatpush1.msra.mxu0 0.0
    %1642 = vmatprep.subr.mxu0 0.0
    %1643 = vmatpush1.msra.mxu0 0.0
    %1644 = vmatprep.subr.mxu0 0.0
    %1645 = vmatpush1.msra.mxu0 0.0
    %1646 = vmatprep.subr.mxu0 0.0
    %1647 = vmatpush1.msra.mxu0 0.0
    %1648 = vmatprep.subr.mxu0 0.0
    %1649 = vmatpush1.msra.mxu0 0.0
    %1650 = vmatprep.subr.mxu0 0.0
    %1651 = vmatpush1.msra.mxu0 0.0
    %1652 = vmatprep.mubr.f32.mxu0 0.0
    %1653 = vmatmul.mubr.f32.gmra.mrb[0].mxu0 %v109
    %v1654 = vpop.f32.mrb[0].mxu0
    %v1655 = vadd.f32 0.0, %v1654
    %v1656 = vpop.f32.mrb[0].mxu0
    %1657 = vdwg.mxu0
    %s1658 = scalar_lea.vmem [#allocation10], 384
    %v1659 = vld [vmem:[%s1658] sm:$0xff]
    %v1660 = vld [vmem:[%s1658 + $0x8] sm:$0xff]
    %v1661 = vld [vmem:[%s1658 + $0x10] sm:$0xff]
    %v1662 = vld [vmem:[%s1658 + $0x18] sm:$0xff]
    %v1663 = vld [vmem:[%s1658 + $0x20] sm:$0xff]
    %v1664 = vld [vmem:[%s1658 + $0x28] sm:$0xff]
    %v1665 = vld [vmem:[%s1658 + $0x30] sm:$0xff]
    %v1666 = vld [vmem:[%s1658 + $0x38] sm:$0xff]
    %v1667 = vld [vmem:[%s1658 + $0x40] sm:$0xff]
    %v1668 = vld [vmem:[%s1658 + $0x48] sm:$0xff]
    %v1669 = vld [vmem:[%s1658 + $0x50] sm:$0xff]
    %v1670 = vld [vmem:[%s1658 + $0x58] sm:$0xff]
    %v1671 = vld [vmem:[%s1658 + $0x60] sm:$0xff]
    %v1672 = vld [vmem:[%s1658 + $0x68] sm:$0xff]
    %v1673 = vld [vmem:[%s1658 + $0x70] sm:$0xff]
    %v1674 = vld [vmem:[%s1658 + $0x78] sm:$0xff]
    %1675 = vmatprep.subr.mxu0 0.0
    %1676 = vmatpush1.msra.mxu0 %v1659
    %1677 = vmatprep.subr.mxu0 0.0
    %1678 = vmatpush1.msra.mxu0 %v1660
    %1679 = vmatprep.subr.mxu0 0.0
    %1680 = vmatpush1.msra.mxu0 %v1661
    %1681 = vmatprep.subr.mxu0 0.0
    %1682 = vmatpush1.msra.mxu0 %v1662
    %1683 = vmatprep.subr.mxu0 0.0
    %1684 = vmatpush1.msra.mxu0 %v1663
    %1685 = vmatprep.subr.mxu0 0.0
    %1686 = vmatpush1.msra.mxu0 %v1664
    %1687 = vmatprep.subr.mxu0 0.0
    %1688 = vmatpush1.msra.mxu0 %v1665
    %1689 = vmatprep.subr.mxu0 0.0
    %1690 = vmatpush1.msra.mxu0 %v1666
    %1691 = vmatprep.subr.mxu0 0.0
    %1692 = vmatpush1.msra.mxu0 %v1667
    %1693 = vmatprep.subr.mxu0 0.0
    %1694 = vmatpush1.msra.mxu0 %v1668
    %1695 = vmatprep.subr.mxu0 0.0
    %1696 = vmatpush1.msra.mxu0 %v1669
    %1697 = vmatprep.subr.mxu0 0.0
    %1698 = vmatpush1.msra.mxu0 %v1670
    %1699 = vmatprep.subr.mxu0 0.0
    %1700 = vmatpush1.msra.mxu0 %v1671
    %1701 = vmatprep.subr.mxu0 0.0
    %1702 = vmatpush1.msra.mxu0 %v1672
    %1703 = vmatprep.subr.mxu0 0.0
    %1704 = vmatpush1.msra.mxu0 %v1673
    %1705 = vmatprep.subr.mxu0 0.0
    %1706 = vmatpush1.msra.mxu0 %v1674
    %1707 = vmatprep.subr.mxu0 0.0
    %1708 = vmatpush1.msra.mxu0 0.0
    %1709 = vmatprep.subr.mxu0 0.0
    %1710 = vmatpush1.msra.mxu0 0.0
    %1711 = vmatprep.subr.mxu0 0.0
    %1712 = vmatpush1.msra.mxu0 0.0
    %1713 = vmatprep.subr.mxu0 0.0
    %1714 = vmatpush1.msra.mxu0 0.0
    %1715 = vmatprep.subr.mxu0 0.0
    %1716 = vmatpush1.msra.mxu0 0.0
    %1717 = vmatprep.subr.mxu0 0.0
    %1718 = vmatpush1.msra.mxu0 0.0
    %1719 = vmatprep.subr.mxu0 0.0
    %1720 = vmatpush1.msra.mxu0 0.0
    %1721 = vmatprep.subr.mxu0 0.0
    %1722 = vmatpush1.msra.mxu0 0.0
    %1723 = vmatprep.subr.mxu0 0.0
    %1724 = vmatpush1.msra.mxu0 0.0
    %1725 = vmatprep.subr.mxu0 0.0
    %1726 = vmatpush1.msra.mxu0 0.0
    %1727 = vmatprep.subr.mxu0 0.0
    %1728 = vmatpush1.msra.mxu0 0.0
    %1729 = vmatprep.subr.mxu0 0.0
    %1730 = vmatpush1.msra.mxu0 0.0
    %1731 = vmatprep.subr.mxu0 0.0
    %1732 = vmatpush1.msra.mxu0 0.0
    %1733 = vmatprep.subr.mxu0 0.0
    %1734 = vmatpush1.msra.mxu0 0.0
    %1735 = vmatprep.subr.mxu0 0.0
    %1736 = vmatpush1.msra.mxu0 0.0
    %1737 = vmatprep.subr.mxu0 0.0
    %1738 = vmatpush1.msra.mxu0 0.0
    %1739 = vmatprep.mubr.f32.mxu0 0.0
    %1740 = vmatmul.mubr.f32.gmra.mrb[0].mxu0 %v1655
    %v1741 = vpop.f32.mrb[0].mxu0
    %v1742 = vadd.f32 0.0, %v1741
    %v1743 = vpop.f32.mrb[0].mxu0
    %1744 = vdwg.mxu0
    %v1745 = vadd.f32 %v1256, %v1742
    %s1746 = scalar_lea.vmem [#allocation8], 384
    %v1747 = vld [vmem:[%s1746] sm:$0xff]
    %v1748 = vld [vmem:[%s1746 + $0x8] sm:$0xff]
    %v1749 = vld [vmem:[%s1746 + $0x10] sm:$0xff]
    %v1750 = vld [vmem:[%s1746 + $0x18] sm:$0xff]
    %v1751 = vld [vmem:[%s1746 + $0x20] sm:$0xff]
    %v1752 = vld [vmem:[%s1746 + $0x28] sm:$0xff]
    %v1753 = vld [vmem:[%s1746 + $0x30] sm:$0xff]
    %v1754 = vld [vmem:[%s1746 + $0x38] sm:$0xff]
    %v1755 = vld [vmem:[%s1746 + $0x40] sm:$0xff]
    %v1756 = vld [vmem:[%s1746 + $0x48] sm:$0xff]
    %v1757 = vld [vmem:[%s1746 + $0x50] sm:$0xff]
    %v1758 = vld [vmem:[%s1746 + $0x58] sm:$0xff]
    %v1759 = vld [vmem:[%s1746 + $0x60] sm:$0xff]
    %v1760 = vld [vmem:[%s1746 + $0x68] sm:$0xff]
    %v1761 = vld [vmem:[%s1746 + $0x70] sm:$0xff]
    %v1762 = vld [vmem:[%s1746 + $0x78] sm:$0xff]
    %1763 = vmatprep.subr.mxu0 0.0
    %1764 = vmatpush1.msra.mxu0 %v1747
    %1765 = vmatprep.subr.mxu0 0.0
    %1766 = vmatpush1.msra.mxu0 %v1748
    %1767 = vmatprep.subr.mxu0 0.0
    %1768 = vmatpush1.msra.mxu0 %v1749
    %1769 = vmatprep.subr.mxu0 0.0
    %1770 = vmatpush1.msra.mxu0 %v1750
    %1771 = vmatprep.subr.mxu0 0.0
    %1772 = vmatpush1.msra.mxu0 %v1751
    %1773 = vmatprep.subr.mxu0 0.0
    %1774 = vmatpush1.msra.mxu0 %v1752
    %1775 = vmatprep.subr.mxu0 0.0
    %1776 = vmatpush1.msra.mxu0 %v1753
    %1777 = vmatprep.subr.mxu0 0.0
    %1778 = vmatpush1.msra.mxu0 %v1754
    %1779 = vmatprep.subr.mxu0 0.0
    %1780 = vmatpush1.msra.mxu0 %v1755
    %1781 = vmatprep.subr.mxu0 0.0
    %1782 = vmatpush1.msra.mxu0 %v1756
    %1783 = vmatprep.subr.mxu0 0.0
    %1784 = vmatpush1.msra.mxu0 %v1757
    %1785 = vmatprep.subr.mxu0 0.0
    %1786 = vmatpush1.msra.mxu0 %v1758
    %1787 = vmatprep.subr.mxu0 0.0
    %1788 = vmatpush1.msra.mxu0 %v1759
    %1789 = vmatprep.subr.mxu0 0.0
    %1790 = vmatpush1.msra.mxu0 %v1760
    %1791 = vmatprep.subr.mxu0 0.0
    %1792 = vmatpush1.msra.mxu0 %v1761
    %1793 = vmatprep.subr.mxu0 0.0
    %1794 = vmatpush1.msra.mxu0 %v1762
    %1795 = vmatprep.subr.mxu0 0.0
    %1796 = vmatpush1.msra.mxu0 0.0
    %1797 = vmatprep.subr.mxu0 0.0
    %1798 = vmatpush1.msra.mxu0 0.0
    %1799 = vmatprep.subr.mxu0 0.0
    %1800 = vmatpush1.msra.mxu0 0.0
    %1801 = vmatprep.subr.mxu0 0.0
    %1802 = vmatpush1.msra.mxu0 0.0
    %1803 = vmatprep.subr.mxu0 0.0
    %1804 = vmatpush1.msra.mxu0 0.0
    %1805 = vmatprep.subr.mxu0 0.0
    %1806 = vmatpush1.msra.mxu0 0.0
    %1807 = vmatprep.subr.mxu0 0.0
    %1808 = vmatpush1.msra.mxu0 0.0
    %1809 = vmatprep.subr.mxu0 0.0
    %1810 = vmatpush1.msra.mxu0 0.0
    %1811 = vmatprep.subr.mxu0 0.0
    %1812 = vmatpush1.msra.mxu0 0.0
    %1813 = vmatprep.subr.mxu0 0.0
    %1814 = vmatpush1.msra.mxu0 0.0
    %1815 = vmatprep.subr.mxu0 0.0
    %1816 = vmatpush1.msra.mxu0 0.0
    %1817 = vmatprep.subr.mxu0 0.0
    %1818 = vmatpush1.msra.mxu0 0.0
    %1819 = vmatprep.subr.mxu0 0.0
    %1820 = vmatpush1.msra.mxu0 0.0
    %1821 = vmatprep.subr.mxu0 0.0
    %1822 = vmatpush1.msra.mxu0 0.0
    %1823 = vmatprep.subr.mxu0 0.0
    %1824 = vmatpush1.msra.mxu0 0.0
    %1825 = vmatprep.subr.mxu0 0.0
    %1826 = vmatpush1.msra.mxu0 0.0
    %1827 = vmatprep.mubr.f32.mxu0 0.0
    %1828 = vmatmul.mubr.f32.gmra.mrb[0].mxu0 %v1572
    %v1829 = vpop.f32.mrb[0].mxu0
    %v1830 = vadd.f32 0.0, %v1829
    %v1831 = vpop.f32.mrb[0].mxu0
    %1832 = vmatprep.mubr.f32.mxu0 0.0
    %1833 = vmatmul.mubr.f32.gmra.mrb[0].mxu0 %v1573
    %v1834 = vpop.f32.mrb[0].mxu0
    %v1835 = vadd.f32 0.0, %v1834
    %v1836 = vpop.f32.mrb[0].mxu0
    %1837 = vmatprep.mubr.f32.mxu0 0.0
    %1838 = vmatmul.mubr.f32.gmra.mrb[0].mxu0 %v1574
    %v1839 = vpop.f32.mrb[0].mxu0
    %v1840 = vadd.f32 0.0, %v1839
    %v1841 = vpop.f32.mrb[0].mxu0
    %1842 = vmatprep.mubr.f32.mxu0 0.0
    %1843 = vmatmul.mubr.f32.gmra.mrb[0].mxu0 %v1575
    %v1844 = vpop.f32.mrb[0].mxu0
    %v1845 = vadd.f32 0.0, %v1844
    %v1846 = vpop.f32.mrb[0].mxu0
    %1847 = vmatprep.mubr.f32.mxu0 0.0
    %1848 = vmatmul.mubr.f32.gmra.mrb[0].mxu0 %v1576
    %v1849 = vpop.f32.mrb[0].mxu0
    %v1850 = vadd.f32 0.0, %v1849
    %v1851 = vpop.f32.mrb[0].mxu0
    %1852 = vmatprep.mubr.f32.mxu0 0.0
    %1853 = vmatmul.mubr.f32.gmra.mrb[0].mxu0 %v1577
    %v1854 = vpop.f32.mrb[0].mxu0
    %v1855 = vadd.f32 0.0, %v1854
    %v1856 = vpop.f32.mrb[0].mxu0
    %1857 = vmatprep.mubr.f32.mxu0 0.0
    %1858 = vmatmul.mubr.f32.gmra.mrb[0].mxu0 %v1578
    %v1859 = vpop.f32.mrb[0].mxu0
    %v1860 = vadd.f32 0.0, %v1859
    %v1861 = vpop.f32.mrb[0].mxu0
    %1862 = vmatprep.mubr.f32.mxu0 0.0
    %1863 = vmatmul.mubr.f32.gmra.mrb[0].mxu0 %v1579
    %v1864 = vpop.f32.mrb[0].mxu0
    %v1865 = vadd.f32 0.0, %v1864
    %v1866 = vpop.f32.mrb[0].mxu0
    %1867 = vmatprep.mubr.f32.mxu0 0.0
    %1868 = vmatmul.mubr.f32.gmra.mrb[0].mxu0 %v1580
    %v1869 = vpop.f32.mrb[0].mxu0
    %v1870 = vadd.f32 0.0, %v1869
    %v1871 = vpop.f32.mrb[0].mxu0
    %1872 = vmatprep.mubr.f32.mxu0 0.0
    %1873 = vmatmul.mubr.f32.gmra.mrb[0].mxu0 %v1581
    %v1874 = vpop.f32.mrb[0].mxu0
    %v1875 = vadd.f32 0.0, %v1874
    %v1876 = vpop.f32.mrb[0].mxu0
    %1877 = vmatprep.mubr.f32.mxu0 0.0
    %1878 = vmatmul.mubr.f32.gmra.mrb[0].mxu0 %v1582
    %v1879 = vpop.f32.mrb[0].mxu0
    %v1880 = vadd.f32 0.0, %v1879
    %v1881 = vpop.f32.mrb[0].mxu0
    %1882 = vmatprep.mubr.f32.mxu0 0.0
    %1883 = vmatmul.mubr.f32.gmra.mrb[0].mxu0 %v1583
    %v1884 = vpop.f32.mrb[0].mxu0
    %v1885 = vadd.f32 0.0, %v1884
    %v1886 = vpop.f32.mrb[0].mxu0
    %1887 = vmatprep.mubr.f32.mxu0 0.0
    %1888 = vmatmul.mubr.f32.gmra.mrb[0].mxu0 %v1584
    %v1889 = vpop.f32.mrb[0].mxu0
    %v1890 = vadd.f32 0.0, %v1889
    %v1891 = vpop.f32.mrb[0].mxu0
    %1892 = vmatprep.mubr.f32.mxu0 0.0
    %1893 = vmatmul.mubr.f32.gmra.mrb[0].mxu0 %v1585
    %v1894 = vpop.f32.mrb[0].mxu0
    %v1895 = vadd.f32 0.0, %v1894
    %v1896 = vpop.f32.mrb[0].mxu0
    %1897 = vmatprep.mubr.f32.mxu0 0.0
    %1898 = vmatmul.mubr.f32.gmra.mrb[0].mxu0 %v1586
    %v1899 = vpop.f32.mrb[0].mxu0
    %v1900 = vadd.f32 0.0, %v1899
    %v1901 = vpop.f32.mrb[0].mxu0
    %1902 = vmatprep.mubr.f32.mxu0 0.0
    %1903 = vmatmul.mubr.f32.gmra.mrb[0].mxu0 %v1587
    %v1904 = vpop.f32.mrb[0].mxu0
    %v1905 = vadd.f32 0.0, %v1904
    %v1906 = vpop.f32.mrb[0].mxu0
    %1907 = vdwg.mxu0
    %s1908 = scalar_lea.vmem %s4, 3
    %v1909 = vld [vmem:[%s1908] sm:$0x1]
    %v1911 = vlaneseq
    %v1912 = vshrl.u32 %v1911, 7
    %v1913 = vsub.s32 0, %v1912
    %v1914 = vrot.slane %v1909, %v1913
    %1916 = vmatprep.subr.mxu0 0.0
    %1917 = vmatpush1.msra.mxu0 %v1830
    %1918 = vmatprep.subr.mxu0 0.0
    %1919 = vmatpush1.msra.mxu0 %v1835
    %1920 = vmatprep.subr.mxu0 0.0
    %1921 = vmatpush1.msra.mxu0 %v1840
    %1922 = vmatprep.subr.mxu0 0.0
    %1923 = vmatpush1.msra.mxu0 %v1845
    %1924 = vmatprep.subr.mxu0 0.0
    %1925 = vmatpush1.msra.mxu0 %v1850
    %1926 = vmatprep.subr.mxu0 0.0
    %1927 = vmatpush1.msra.mxu0 %v1855
    %1928 = vmatprep.subr.mxu0 0.0
    %1929 = vmatpush1.msra.mxu0 %v1860
    %1930 = vmatprep.subr.mxu0 0.0
    %1931 = vmatpush1.msra.mxu0 %v1865
    %1932 = vmatprep.subr.mxu0 0.0
    %1933 = vmatpush1.msra.mxu0 %v1870
    %1934 = vmatprep.subr.mxu0 0.0
    %1935 = vmatpush1.msra.mxu0 %v1875
    %1936 = vmatprep.subr.mxu0 0.0
    %1937 = vmatpush1.msra.mxu0 %v1880
    %1938 = vmatprep.subr.mxu0 0.0
    %1939 = vmatpush1.msra.mxu0 %v1885
    %1940 = vmatprep.subr.mxu0 0.0
    %1941 = vmatpush1.msra.mxu0 %v1890
    %1942 = vmatprep.subr.mxu0 0.0
    %1943 = vmatpush1.msra.mxu0 %v1895
    %1944 = vmatprep.subr.mxu0 0.0
    %1945 = vmatpush1.msra.mxu0 %v1900
    %1946 = vmatprep.subr.mxu0 0.0
    %1947 = vmatpush1.msra.mxu0 %v1905
    %1948 = vmatprep.subr.mxu0 0.0
    %1949 = vmatpush1.msra.mxu0 0.0
    %1950 = vmatprep.subr.mxu0 0.0
    %1951 = vmatpush1.msra.mxu0 0.0
    %1952 = vmatprep.subr.mxu0 0.0
    %1953 = vmatpush1.msra.mxu0 0.0
    %1954 = vmatprep.subr.mxu0 0.0
    %1955 = vmatpush1.msra.mxu0 0.0
    %1956 = vmatprep.subr.mxu0 0.0
    %1957 = vmatpush1.msra.mxu0 0.0
    %1958 = vmatprep.subr.mxu0 0.0
    %1959 = vmatpush1.msra.mxu0 0.0
    %1960 = vmatprep.subr.mxu0 0.0
    %1961 = vmatpush1.msra.mxu0 0.0
    %1962 = vmatprep.subr.mxu0 0.0
    %1963 = vmatpush1.msra.mxu0 0.0
    %1964 = vmatprep.subr.mxu0 0.0
    %1965 = vmatpush1.msra.mxu0 0.0
    %1966 = vmatprep.subr.mxu0 0.0
    %1967 = vmatpush1.msra.mxu0 0.0
    %1968 = vmatprep.subr.mxu0 0.0
    %1969 = vmatpush1.msra.mxu0 0.0
    %1970 = vmatprep.subr.mxu0 0.0
    %1971 = vmatpush1.msra.mxu0 0.0
    %1972 = vmatprep.subr.mxu0 0.0
    %1973 = vmatpush1.msra.mxu0 0.0
    %1974 = vmatprep.subr.mxu0 0.0
    %1975 = vmatpush1.msra.mxu0 0.0
    %1976 = vmatprep.subr.mxu0 0.0
    %1977 = vmatpush1.msra.mxu0 0.0
    %1978 = vmatprep.subr.mxu0 0.0
    %1979 = vmatpush1.msra.mxu0 0.0
    %1980 = vmatprep.mubr.f32.mxu0 0.0
    %1981 = vmatmul.mubr.f32.gmra.mrb[0].mxu0 %v93
    %v1982 = vpop.f32.mrb[0].mxu0
    %v1983 = vadd.f32 %v1914, %v1982
    %v1984 = vpop.f32.mrb[0].mxu0
    %1985 = vmatprep.mubr.f32.mxu0 0.0
    %1986 = vmatmul.mubr.f32.gmra.mrb[0].mxu0 %v94
    %v1987 = vpop.f32.mrb[0].mxu0
    %v1988 = vadd.f32 %v1914, %v1987
    %v1989 = vpop.f32.mrb[0].mxu0
    %1990 = vmatprep.mubr.f32.mxu0 0.0
    %1991 = vmatmul.mubr.f32.gmra.mrb[0].mxu0 %v95
    %v1992 = vpop.f32.mrb[0].mxu0
    %v1993 = vadd.f32 %v1914, %v1992
    %v1994 = vpop.f32.mrb[0].mxu0
    %1995 = vmatprep.mubr.f32.mxu0 0.0
    %1996 = vmatmul.mubr.f32.gmra.mrb[0].mxu0 %v96
    %v1997 = vpop.f32.mrb[0].mxu0
    %v1998 = vadd.f32 %v1914, %v1997
    %v1999 = vpop.f32.mrb[0].mxu0
    %2000 = vmatprep.mubr.f32.mxu0 0.0
    %2001 = vmatmul.mubr.f32.gmra.mrb[0].mxu0 %v97
    %v2002 = vpop.f32.mrb[0].mxu0
    %v2003 = vadd.f32 %v1914, %v2002
    %v2004 = vpop.f32.mrb[0].mxu0
    %2005 = vmatprep.mubr.f32.mxu0 0.0
    %2006 = vmatmul.mubr.f32.gmra.mrb[0].mxu0 %v98
    %v2007 = vpop.f32.mrb[0].mxu0
    %v2008 = vadd.f32 %v1914, %v2007
    %v2009 = vpop.f32.mrb[0].mxu0
    %2010 = vmatprep.mubr.f32.mxu0 0.0
    %2011 = vmatmul.mubr.f32.gmra.mrb[0].mxu0 %v99
    %v2012 = vpop.f32.mrb[0].mxu0
    %v2013 = vadd.f32 %v1914, %v2012
    %v2014 = vpop.f32.mrb[0].mxu0
    %2015 = vmatprep.mubr.f32.mxu0 0.0
    %2016 = vmatmul.mubr.f32.gmra.mrb[0].mxu0 %v100
    %v2017 = vpop.f32.mrb[0].mxu0
    %v2018 = vadd.f32 %v1914, %v2017
    %v2019 = vpop.f32.mrb[0].mxu0
    %2020 = vmatprep.mubr.f32.mxu0 0.0
    %2021 = vmatmul.mubr.f32.gmra.mrb[0].mxu0 %v101
    %v2022 = vpop.f32.mrb[0].mxu0
    %v2023 = vadd.f32 %v1914, %v2022
    %v2024 = vpop.f32.mrb[0].mxu0
    %2025 = vmatprep.mubr.f32.mxu0 0.0
    %2026 = vmatmul.mubr.f32.gmra.mrb[0].mxu0 %v102
    %v2027 = vpop.f32.mrb[0].mxu0
    %v2028 = vadd.f32 %v1914, %v2027
    %v2029 = vpop.f32.mrb[0].mxu0
    %2030 = vmatprep.mubr.f32.mxu0 0.0
    %2031 = vmatmul.mubr.f32.gmra.mrb[0].mxu0 %v103
    %v2032 = vpop.f32.mrb[0].mxu0
    %v2033 = vadd.f32 %v1914, %v2032
    %v2034 = vpop.f32.mrb[0].mxu0
    %2035 = vmatprep.mubr.f32.mxu0 0.0
    %2036 = vmatmul.mubr.f32.gmra.mrb[0].mxu0 %v104
    %v2037 = vpop.f32.mrb[0].mxu0
    %v2038 = vadd.f32 %v1914, %v2037
    %v2039 = vpop.f32.mrb[0].mxu0
    %2040 = vmatprep.mubr.f32.mxu0 0.0
    %2041 = vmatmul.mubr.f32.gmra.mrb[0].mxu0 %v105
    %v2042 = vpop.f32.mrb[0].mxu0
    %v2043 = vadd.f32 %v1914, %v2042
    %v2044 = vpop.f32.mrb[0].mxu0
    %2045 = vmatprep.mubr.f32.mxu0 0.0
    %2046 = vmatmul.mubr.f32.gmra.mrb[0].mxu0 %v106
    %v2047 = vpop.f32.mrb[0].mxu0
    %v2048 = vadd.f32 %v1914, %v2047
    %v2049 = vpop.f32.mrb[0].mxu0
    %2050 = vmatprep.mubr.f32.mxu0 0.0
    %2051 = vmatmul.mubr.f32.gmra.mrb[0].mxu0 %v107
    %v2052 = vpop.f32.mrb[0].mxu0
    %v2053 = vadd.f32 %v1914, %v2052
    %v2054 = vpop.f32.mrb[0].mxu0
    %2055 = vmatprep.mubr.f32.mxu0 0.0
    %2056 = vmatmul.mubr.f32.gmra.mrb[0].mxu0 %v108
    %v2057 = vpop.f32.mrb[0].mxu0
    %v2058 = vadd.f32 %v1914, %v2057
    %v2059 = vpop.f32.mrb[0].mxu0
    %2060 = vdwg.mxu0
    %v2061 = vmax.f32 %v1983, 0.0
    %v2062 = vmax.f32 %v1988, 0.0
    %v2063 = vmax.f32 %v1993, 0.0
    %v2064 = vmax.f32 %v1998, 0.0
    %v2065 = vmax.f32 %v2003, 0.0
    %v2066 = vmax.f32 %v2008, 0.0
    %v2067 = vmax.f32 %v2013, 0.0
    %v2068 = vmax.f32 %v2018, 0.0
    %v2069 = vmax.f32 %v2023, 0.0
    %v2070 = vmax.f32 %v2028, 0.0
    %v2071 = vmax.f32 %v2033, 0.0
    %v2072 = vmax.f32 %v2038, 0.0
    %v2073 = vmax.f32 %v2043, 0.0
    %v2074 = vmax.f32 %v2048, 0.0
    %v2075 = vmax.f32 %v2053, 0.0
    %v2076 = vmax.f32 %v2058, 0.0
    %2077 = vmatprep.subr.mxu0 0.0
    %2078 = vmatpush1.msra.mxu0 %v2061
    %2079 = vmatprep.subr.mxu0 0.0
    %2080 = vmatpush1.msra.mxu0 %v2062
    %2081 = vmatprep.subr.mxu0 0.0
    %2082 = vmatpush1.msra.mxu0 %v2063
    %2083 = vmatprep.subr.mxu0 0.0
    %2084 = vmatpush1.msra.mxu0 %v2064
    %2085 = vmatprep.subr.mxu0 0.0
    %2086 = vmatpush1.msra.mxu0 %v2065
    %2087 = vmatprep.subr.mxu0 0.0
    %2088 = vmatpush1.msra.mxu0 %v2066
    %2089 = vmatprep.subr.mxu0 0.0
    %2090 = vmatpush1.msra.mxu0 %v2067
    %2091 = vmatprep.subr.mxu0 0.0
    %2092 = vmatpush1.msra.mxu0 %v2068
    %2093 = vmatprep.subr.mxu0 0.0
    %2094 = vmatpush1.msra.mxu0 %v2069
    %2095 = vmatprep.subr.mxu0 0.0
    %2096 = vmatpush1.msra.mxu0 %v2070
    %2097 = vmatprep.subr.mxu0 0.0
    %2098 = vmatpush1.msra.mxu0 %v2071
    %2099 = vmatprep.subr.mxu0 0.0
    %2100 = vmatpush1.msra.mxu0 %v2072
    %2101 = vmatprep.subr.mxu0 0.0
    %2102 = vmatpush1.msra.mxu0 %v2073
    %2103 = vmatprep.subr.mxu0 0.0
    %2104 = vmatpush1.msra.mxu0 %v2074
    %2105 = vmatprep.subr.mxu0 0.0
    %2106 = vmatpush1.msra.mxu0 %v2075
    %2107 = vmatprep.subr.mxu0 0.0
    %2108 = vmatpush1.msra.mxu0 %v2076
    %2109 = vmatprep.subr.mxu0 0.0
    %2110 = vmatpush1.msra.mxu0 0.0
    %2111 = vmatprep.subr.mxu0 0.0
    %2112 = vmatpush1.msra.mxu0 0.0
    %2113 = vmatprep.subr.mxu0 0.0
    %2114 = vmatpush1.msra.mxu0 0.0
    %2115 = vmatprep.subr.mxu0 0.0
    %2116 = vmatpush1.msra.mxu0 0.0
    %2117 = vmatprep.subr.mxu0 0.0
    %2118 = vmatpush1.msra.mxu0 0.0
    %2119 = vmatprep.subr.mxu0 0.0
    %2120 = vmatpush1.msra.mxu0 0.0
    %2121 = vmatprep.subr.mxu0 0.0
    %2122 = vmatpush1.msra.mxu0 0.0
    %2123 = vmatprep.subr.mxu0 0.0
    %2124 = vmatpush1.msra.mxu0 0.0
    %2125 = vmatprep.subr.mxu0 0.0
    %2126 = vmatpush1.msra.mxu0 0.0
    %2127 = vmatprep.subr.mxu0 0.0
    %2128 = vmatpush1.msra.mxu0 0.0
    %2129 = vmatprep.subr.mxu0 0.0
    %2130 = vmatpush1.msra.mxu0 0.0
    %2131 = vmatprep.subr.mxu0 0.0
    %2132 = vmatpush1.msra.mxu0 0.0
    %2133 = vmatprep.subr.mxu0 0.0
    %2134 = vmatpush1.msra.mxu0 0.0
    %2135 = vmatprep.subr.mxu0 0.0
    %2136 = vmatpush1.msra.mxu0 0.0
    %2137 = vmatprep.subr.mxu0 0.0
    %2138 = vmatpush1.msra.mxu0 0.0
    %2139 = vmatprep.subr.mxu0 0.0
    %2140 = vmatpush1.msra.mxu0 0.0
    %2141 = vmatprep.mubr.f32.mxu0 0.0
    %2142 = vmatmul.mubr.f32.gmra.mrb[0].mxu0 %v109
    %v2143 = vpop.f32.mrb[0].mxu0
    %v2144 = vadd.f32 0.0, %v2143
    %v2145 = vpop.f32.mrb[0].mxu0
    %2146 = vdwg.mxu0
    %s2147 = scalar_lea.vmem [#allocation10], 512
    %v2148 = vld [vmem:[%s2147] sm:$0xff]
    %v2149 = vld [vmem:[%s2147 + $0x8] sm:$0xff]
    %v2150 = vld [vmem:[%s2147 + $0x10] sm:$0xff]
    %v2151 = vld [vmem:[%s2147 + $0x18] sm:$0xff]
    %v2152 = vld [vmem:[%s2147 + $0x20] sm:$0xff]
    %v2153 = vld [vmem:[%s2147 + $0x28] sm:$0xff]
    %v2154 = vld [vmem:[%s2147 + $0x30] sm:$0xff]
    %v2155 = vld [vmem:[%s2147 + $0x38] sm:$0xff]
    %v2156 = vld [vmem:[%s2147 + $0x40] sm:$0xff]
    %v2157 = vld [vmem:[%s2147 + $0x48] sm:$0xff]
    %v2158 = vld [vmem:[%s2147 + $0x50] sm:$0xff]
    %v2159 = vld [vmem:[%s2147 + $0x58] sm:$0xff]
    %v2160 = vld [vmem:[%s2147 + $0x60] sm:$0xff]
    %v2161 = vld [vmem:[%s2147 + $0x68] sm:$0xff]
    %v2162 = vld [vmem:[%s2147 + $0x70] sm:$0xff]
    %v2163 = vld [vmem:[%s2147 + $0x78] sm:$0xff]
    %2164 = vmatprep.subr.mxu0 0.0
    %2165 = vmatpush1.msra.mxu0 %v2148
    %2166 = vmatprep.subr.mxu0 0.0
    %2167 = vmatpush1.msra.mxu0 %v2149
    %2168 = vmatprep.subr.mxu0 0.0
    %2169 = vmatpush1.msra.mxu0 %v2150
    %2170 = vmatprep.subr.mxu0 0.0
    %2171 = vmatpush1.msra.mxu0 %v2151
    %2172 = vmatprep.subr.mxu0 0.0
    %2173 = vmatpush1.msra.mxu0 %v2152
    %2174 = vmatprep.subr.mxu0 0.0
    %2175 = vmatpush1.msra.mxu0 %v2153
    %2176 = vmatprep.subr.mxu0 0.0
    %2177 = vmatpush1.msra.mxu0 %v2154
    %2178 = vmatprep.subr.mxu0 0.0
    %2179 = vmatpush1.msra.mxu0 %v2155
    %2180 = vmatprep.subr.mxu0 0.0
    %2181 = vmatpush1.msra.mxu0 %v2156
    %2182 = vmatprep.subr.mxu0 0.0
    %2183 = vmatpush1.msra.mxu0 %v2157
    %2184 = vmatprep.subr.mxu0 0.0
    %2185 = vmatpush1.msra.mxu0 %v2158
    %2186 = vmatprep.subr.mxu0 0.0
    %2187 = vmatpush1.msra.mxu0 %v2159
    %2188 = vmatprep.subr.mxu0 0.0
    %2189 = vmatpush1.msra.mxu0 %v2160
    %2190 = vmatprep.subr.mxu0 0.0
    %2191 = vmatpush1.msra.mxu0 %v2161
    %2192 = vmatprep.subr.mxu0 0.0
    %2193 = vmatpush1.msra.mxu0 %v2162
    %2194 = vmatprep.subr.mxu0 0.0
    %2195 = vmatpush1.msra.mxu0 %v2163
    %2196 = vmatprep.subr.mxu0 0.0
    %2197 = vmatpush1.msra.mxu0 0.0
    %2198 = vmatprep.subr.mxu0 0.0
    %2199 = vmatpush1.msra.mxu0 0.0
    %2200 = vmatprep.subr.mxu0 0.0
    %2201 = vmatpush1.msra.mxu0 0.0
    %2202 = vmatprep.subr.mxu0 0.0
    %2203 = vmatpush1.msra.mxu0 0.0
    %2204 = vmatprep.subr.mxu0 0.0
    %2205 = vmatpush1.msra.mxu0 0.0
    %2206 = vmatprep.subr.mxu0 0.0
    %2207 = vmatpush1.msra.mxu0 0.0
    %2208 = vmatprep.subr.mxu0 0.0
    %2209 = vmatpush1.msra.mxu0 0.0
    %2210 = vmatprep.subr.mxu0 0.0
    %2211 = vmatpush1.msra.mxu0 0.0
    %2212 = vmatprep.subr.mxu0 0.0
    %2213 = vmatpush1.msra.mxu0 0.0
    %2214 = vmatprep.subr.mxu0 0.0
    %2215 = vmatpush1.msra.mxu0 0.0
    %2216 = vmatprep.subr.mxu0 0.0
    %2217 = vmatpush1.msra.mxu0 0.0
    %2218 = vmatprep.subr.mxu0 0.0
    %2219 = vmatpush1.msra.mxu0 0.0
    %2220 = vmatprep.subr.mxu0 0.0
    %2221 = vmatpush1.msra.mxu0 0.0
    %2222 = vmatprep.subr.mxu0 0.0
    %2223 = vmatpush1.msra.mxu0 0.0
    %2224 = vmatprep.subr.mxu0 0.0
    %2225 = vmatpush1.msra.mxu0 0.0
    %2226 = vmatprep.subr.mxu0 0.0
    %2227 = vmatpush1.msra.mxu0 0.0
    %2228 = vmatprep.mubr.f32.mxu0 0.0
    %2229 = vmatmul.mubr.f32.gmra.mrb[0].mxu0 %v2144
    %v2230 = vpop.f32.mrb[0].mxu0
    %v2231 = vadd.f32 0.0, %v2230
    %v2232 = vpop.f32.mrb[0].mxu0
    %2233 = vdwg.mxu0
    %v2234 = vadd.f32 %v1745, %v2231
    %v2235 = vld [vmem:[%s6] sm:$0x1]
    %v2237 = vlaneseq
    %v2238 = vshrl.u32 %v2237, 7
    %v2239 = vsub.s32 0, %v2238
    %v2240 = vrot.slane %v2235, %v2239
    %v2242 = vadd.f32 %v2234, %v2240
    %2243 = vst [vmem:[#allocation11] sm:$0xff] %v2242
    // Predicated region
    $region50: #{tpu_custom_call.1} parent=1 // pred_check
      _
    $region51: #{tpu_custom_call.1} parent=1 // pred_check_branch
      %2245 = sbr.rel (0) target = $region53
    $region52: #{tpu_custom_call.1} parent=1 // pred_region
      %s2247 = ssub.s32 128, 128
      %2248 = vsyncadd [#allocation4], %s2247
      %s2250 = sshll.u32 [#allocation11], 4
      %s2251 = int_to_ptr.vmem [resolvable:$true] %s2250
      %2253 = dma.vmem_to_hbm [thread:$0]  %s2251, 128, %s7, [#allocation4]
    $region53: #{tpu_custom_call.1} parent=1 // pred_fallthru
      _
    // Predicated region
    $region54: #{tpu_custom_call.1} parent=1 // pred_check
      _
    $region55: #{tpu_custom_call.1} parent=1 // pred_check_branch
      %2255 = sbr.rel (0) target = $region57
    $region56: #{tpu_custom_call.1} parent=1 // pred_region
      %2256 = dma.done [#allocation4], 128
    $region57: #{tpu_custom_call.1} parent=1 // pred_fallthru
      _
    %2257 = vsyncpa [#allocation3], 1
    %2258 = vsyncpa [#allocation6], 1
    %2259 = vsyncpa [#allocation9], 1
    %2260 = vsyncpa [#allocation4], 1

</llo_original>
